<compile_context>
chip_gen: v6e
topology: v6e:2x2x1
jax: 0.10.0
libtpu: 0.0.40
codegen_flags: <defaults>
</compile_context>

<pallas_src>
import math

import jax
import jax.numpy as jnp
from jax.experimental import pallas as pl
from jax.experimental.pallas import tpu as pltpu

HIDDEN = 100
OUT = 10
PAD = 128          # lane-aligned width used for all hidden / output dims
N_SQUARE = 5       # hidden_layer2..5 (+ReLU) and output_layer (no ReLU)


def mlp_kernel(x_ref, w1_ref, wr_ref, b_ref, o_ref):
    """x:[tb,F] f32 (or bf16), w1:[F,128] bf16, wr:[5,128,128] bf16, b:[8,128] f32."""
    dt = w1_ref.dtype

    # hidden_layer1: Linear + ReLU  (Dropout == identity in eval mode).
    # Cast x to the weight dtype *inside* the kernel (VPU work, hidden under DMA)
    # instead of materializing a bf16 copy of x in HBM.
    x = x_ref[...].astype(dt)
    h = jnp.dot(x, w1_ref[...], preferred_element_type=jnp.float32)
    h = jnp.maximum(h + b_ref[0:1, :], 0.0)

    # hidden_layer2..5: Linear + ReLU (statically unrolled over stacked weights)
    for l in range(4):
        h = jnp.dot(h.astype(dt), wr_ref[l], preferred_element_type=jnp.float32)
        h = jnp.maximum(h + b_ref[l + 1:l + 2, :], 0.0)

    # output_layer: Linear, no activation
    h = jnp.dot(h.astype(dt), wr_ref[4], preferred_element_type=jnp.float32)
    o_ref[...] = (h + b_ref[5:6, :]).astype(o_ref.dtype)


def _pick_tile_b(B, max_tile=512):
    """Choose the batch tile.

    - Cap at 512 rows: double-buffered f32 x tile (512*3072*4*2 ~= 12.6 MB) plus
      weights/outputs stays inside even v5e's raised VMEM budget.
    - Prefer an even number of grid steps so v7x's two TensorCores get equal work.
    - Minimise ragged-tail waste; the tail block itself is handled by the cdiv grid.
    """
    if B <= max_tile:
        return B                      # single full-batch block (always a legal block)
    best_key, best_t = None, max_tile
    for t in (512, 448, 384, 320, 256, 192, 128):
        steps = pl.cdiv(B, t)
        waste = steps * t - B
        key = (steps % 2 != 0, waste, -t)   # even steps, then least waste, then biggest tile
        if best_key is None or key < best_key:
            best_key, best_t = key, t
    return best_t


def dnn_forward(x, params, *, tile_b=None, out_dtype=jnp.float32):
    """Forward pass. x: [B, F] float array. Returns [B, 10] logits (out_dtype)."""
    w1, wr, b = params
    B, F = x.shape
    assert w1.shape == (F, PAD), f"w1 shape {w1.shape} != ({F}, {PAD})"
    if tile_b is None:
        tile_b = _pick_tile_b(B)
    grid = (pl.cdiv(B, tile_b),)   # ragged tail OK: OOB output rows are dropped

    def call(single_buffer_weights):
        if single_buffer_weights:
            # Grid-invariant inputs: fetched once; single-buffer to save VMEM.
            inv_spec = lambda shape, imap: pl.BlockSpec(
                shape, imap, pipeline_mode=pl.Buffered(1))
        else:
            inv_spec = pl.BlockSpec
        return pl.pallas_call(
            mlp_kernel,
            out_shape=jax.ShapeDtypeStruct((B, PAD), out_dtype),
            grid=grid,
            in_specs=[
                pl.BlockSpec((tile_b, F), lambda i: (i, 0)),       # x, native dtype
                inv_spec(w1.shape, lambda i: (0, 0)),              # grid-invariant
                inv_spec(wr.shape, lambda i: (0, 0, 0)),           # grid-invariant
                inv_spec(b.shape, lambda i: (0, 0)),               # grid-invariant
            ],
            out_specs=pl.BlockSpec((tile_b, PAD), lambda i: (i, 0)),
            compiler_params=pltpu.CompilerParams(
                dimension_semantics=("parallel",),
                vmem_limit_bytes=48 << 20),
        )(x, w1, wr, b)

    try:
        out = call(single_buffer_weights=True)
    except Exception:
        # Older JAX without BlockSpec.pipeline_mode / Buffered(1): fall back to
        # default double-buffered weights (correctness identical, ~1 MB more VMEM).
        out = call(single_buffer_weights=False)

    # Strip the zero-padded logit columns outside the kernel (keeps the in-kernel
    # store lane-dense / unmasked).
    return out[:, :OUT]


def init_params(key, num_feature, dtype=jnp.bfloat16):
    """PyTorch nn.Linear default init U(-1/sqrt(fan_in), 1/sqrt(fan_in)),
    zero-padded to lane-aligned output widths and packed into 3 arrays."""
    dims = [(num_feature, HIDDEN)] + [(HIDDEN, HIDDEN)] * 4 + [(HIDDEN, OUT)]
    ws, bs = [], []
    for fan_in, fan_out in dims:
        key, kw, kb = jax.random.split(key, 3)
        bound = 1.0 / math.sqrt(fan_in)
        ws.append(jax.random.uniform(kw, (fan_in, fan_out), jnp.float32, -bound, bound))
        bs.append(jax.random.uniform(kb, (fan_out,), jnp.float32, -bound, bound))

    # First (rectangular) weight: [F, 128]; feature rows unpadded (x is read as-is).
    w1 = jnp.zeros((num_feature, PAD), jnp.float32)
    w1 = w1.at[:, :HIDDEN].set(ws[0]).astype(dtype)

    # Stacked square weights: layers 2..5 and the output layer -> [5, 128, 128]
    wr = jnp.zeros((N_SQUARE, PAD, PAD), jnp.float32)
    for l in range(4):
        wr = wr.at[l, :HIDDEN, :HIDDEN].set(ws[l + 1])
    wr = wr.at[4, :HIDDEN, :OUT].set(ws[5])
    wr = wr.astype(dtype)

    # Stacked biases (f32 for the VPU epilogue; padded to 8 sublanes): [8, 128]
    b = jnp.zeros((8, PAD), jnp.float32)
    for l in range(5):
        b = b.at[l, :HIDDEN].set(bs[l])
    b = b.at[5, :OUT].set(bs[5])

    return w1, wr, b


def reference_forward(x, params):
    """Pure-JAX mirror of the kernel (same packed params / dtypes)."""
    w1, wr, b = params
    dt = w1.dtype
    h = x.astype(dt)
    h = jnp.maximum(jnp.dot(h, w1, preferred_element_type=jnp.float32) + b[0:1], 0.0)
    for l in range(4):
        h = jnp.dot(h.astype(dt), wr[l], preferred_element_type=jnp.float32)
        h = jnp.maximum(h + b[l + 1:l + 2], 0.0)
    h = jnp.dot(h.astype(dt), wr[4], preferred_element_type=jnp.float32) + b[5:6]
    return h[:, :OUT]


if __name__ == "__main__":
    B, num_feature = 8, 32  # small synthetic shapes (CIFAR-10 would be 3072 features)
    key = jax.random.PRNGKey(0)
    kx, kp = jax.random.split(key)
    x = jax.random.normal(kx, (B, num_feature), jnp.float32)
    params = init_params(kp, num_feature)

    out = jax.block_until_ready(dnn_forward(x, params))

    ref = reference_forward(x, params)
    assert out.shape == (B, OUT)
    assert out.dtype == jnp.float32
    assert jnp.allclose(out, ref, atol=1e-3, rtol=1e-3), "mismatch vs JAX reference"

    print("KERNEL_OK")
</pallas_src>

<mosaic_0001>
module attributes {stable_mosaic.version = 11 : i64} {
  func.func @mlp_kernel(%arg0: i32, %arg1: memref<8x32xf32, #tpu.memory_space<vmem>>, %arg2: memref<32x128xbf16, #tpu.memory_space<vmem>>, %arg3: memref<5x128x128xbf16, #tpu.memory_space<vmem>>, %arg4: memref<8x128xf32, #tpu.memory_space<vmem>>, %arg5: memref<8x128xf32, #tpu.memory_space<vmem>>) attributes {dimension_semantics = [#tpu.dimension_semantics<parallel>], iteration_bounds = array<i64: 1>, scalar_prefetch = 0 : i64, scratch_operands = 0 : i64, tpu.core_type = #tpu.core_type<tc>, window_params = [{transform_indices = @transform_0, window_bounds = array<i64: 8, 32>}, {pipeline_mode = #tpu.pipeline_mode<synchronous>, transform_indices = @transform_1, window_bounds = array<i64: 32, 128>}, {pipeline_mode = #tpu.pipeline_mode<synchronous>, transform_indices = @transform_2, window_bounds = array<i64: 5, 128, 128>}, {pipeline_mode = #tpu.pipeline_mode<synchronous>, transform_indices = @transform_3, window_bounds = array<i64: 8, 128>}, {transform_indices = @transform_4, window_bounds = array<i64: 8, 128>}]} {
    %c0 = arith.constant 0 : index
    %c0_0 = arith.constant 0 : index
    %0 = vector.load %arg1[%c0, %c0_0] : memref<8x32xf32, #tpu.memory_space<vmem>>, vector<8x32xf32>
    %1 = arith.truncf %0 : vector<8x32xf32> to vector<8x32xbf16>
    %c0_1 = arith.constant 0 : index
    %c0_2 = arith.constant 0 : index
    %2 = vector.load %arg2[%c0_1, %c0_2] : memref<32x128xbf16, #tpu.memory_space<vmem>>, vector<32x128xbf16>
    %cst = arith.constant dense<0.000000e+00> : vector<8x128xf32>
    %3 = tpu.matmul %1, %2, %cst {dimension_numbers = #tpu.dot_dimension_numbers<[1], [0], [0], [1], [0, 0, 1, 1], [], []>} : vector<8x32xbf16>, vector<32x128xbf16>, vector<8x128xf32> -> vector<8x128xf32>
    %c0_3 = arith.constant 0 : index
    %c0_4 = arith.constant 0 : index
    %4 = vector.load %arg4[%c0_3, %c0_4] : memref<8x128xf32, #tpu.memory_space<vmem>>, vector<1x128xf32>
    %5 = vector.broadcast %4 : vector<1x128xf32> to vector<8x128xf32>
    %6 = arith.addf %3, %5 : vector<8x128xf32>
    %cst_5 = arith.constant 0.000000e+00 : f32
    %7 = vector.broadcast %cst_5 : f32 to vector<8x128xf32>
    %8 = arith.maximumf %6, %7 : vector<8x128xf32>
    %9 = arith.truncf %8 : vector<8x128xf32> to vector<8x128xbf16>
    %c0_6 = arith.constant 0 : index
    %c0_7 = arith.constant 0 : index
    %c0_8 = arith.constant 0 : index
    %10 = vector.load %arg3[%c0_6, %c0_7, %c0_8] : memref<5x128x128xbf16, #tpu.memory_space<vmem>>, vector<1x128x128xbf16>
    %11 = vector.shape_cast %10 : vector<1x128x128xbf16> to vector<128x128xbf16>
    %cst_9 = arith.constant dense<0.000000e+00> : vector<8x128xf32>
    %12 = tpu.matmul %9, %11, %cst_9 {dimension_numbers = #tpu.dot_dimension_numbers<[1], [0], [0], [1], [0, 0, 1, 1], [], []>} : vector<8x128xbf16>, vector<128x128xbf16>, vector<8x128xf32> -> vector<8x128xf32>
    %c1 = arith.constant 1 : index
    %c0_10 = arith.constant 0 : index
    %13 = vector.load %arg4[%c1, %c0_10] : memref<8x128xf32, #tpu.memory_space<vmem>>, vector<1x128xf32>
    %14 = vector.broadcast %13 : vector<1x128xf32> to vector<8x128xf32>
    %15 = arith.addf %12, %14 : vector<8x128xf32>
    %cst_11 = arith.constant 0.000000e+00 : f32
    %16 = vector.broadcast %cst_11 : f32 to vector<8x128xf32>
    %17 = arith.maximumf %15, %16 : vector<8x128xf32>
    %18 = arith.truncf %17 : vector<8x128xf32> to vector<8x128xbf16>
    %c1_12 = arith.constant 1 : index
    %c0_13 = arith.constant 0 : index
    %c0_14 = arith.constant 0 : index
    %19 = vector.load %arg3[%c1_12, %c0_13, %c0_14] : memref<5x128x128xbf16, #tpu.memory_space<vmem>>, vector<1x128x128xbf16>
    %20 = vector.shape_cast %19 : vector<1x128x128xbf16> to vector<128x128xbf16>
    %cst_15 = arith.constant dense<0.000000e+00> : vector<8x128xf32>
    %21 = tpu.matmul %18, %20, %cst_15 {dimension_numbers = #tpu.dot_dimension_numbers<[1], [0], [0], [1], [0, 0, 1, 1], [], []>} : vector<8x128xbf16>, vector<128x128xbf16>, vector<8x128xf32> -> vector<8x128xf32>
    %c2 = arith.constant 2 : index
    %c0_16 = arith.constant 0 : index
    %22 = vector.load %arg4[%c2, %c0_16] : memref<8x128xf32, #tpu.memory_space<vmem>>, vector<1x128xf32>
    %23 = vector.broadcast %22 : vector<1x128xf32> to vector<8x128xf32>
    %24 = arith.addf %21, %23 : vector<8x128xf32>
    %cst_17 = arith.constant 0.000000e+00 : f32
    %25 = vector.broadcast %cst_17 : f32 to vector<8x128xf32>
    %26 = arith.maximumf %24, %25 : vector<8x128xf32>
    %27 = arith.truncf %26 : vector<8x128xf32> to vector<8x128xbf16>
    %c2_18 = arith.constant 2 : index
    %c0_19 = arith.constant 0 : index
    %c0_20 = arith.constant 0 : index
    %28 = vector.load %arg3[%c2_18, %c0_19, %c0_20] : memref<5x128x128xbf16, #tpu.memory_space<vmem>>, vector<1x128x128xbf16>
    %29 = vector.shape_cast %28 : vector<1x128x128xbf16> to vector<128x128xbf16>
    %cst_21 = arith.constant dense<0.000000e+00> : vector<8x128xf32>
    %30 = tpu.matmul %27, %29, %cst_21 {dimension_numbers = #tpu.dot_dimension_numbers<[1], [0], [0], [1], [0, 0, 1, 1], [], []>} : vector<8x128xbf16>, vector<128x128xbf16>, vector<8x128xf32> -> vector<8x128xf32>
    %c3 = arith.constant 3 : index
    %c0_22 = arith.constant 0 : index
    %31 = vector.load %arg4[%c3, %c0_22] : memref<8x128xf32, #tpu.memory_space<vmem>>, vector<1x128xf32>
    %32 = vector.broadcast %31 : vector<1x128xf32> to vector<8x128xf32>
    %33 = arith.addf %30, %32 : vector<8x128xf32>
    %cst_23 = arith.constant 0.000000e+00 : f32
    %34 = vector.broadcast %cst_23 : f32 to vector<8x128xf32>
    %35 = arith.maximumf %33, %34 : vector<8x128xf32>
    %36 = arith.truncf %35 : vector<8x128xf32> to vector<8x128xbf16>
    %c3_24 = arith.constant 3 : index
    %c0_25 = arith.constant 0 : index
    %c0_26 = arith.constant 0 : index
    %37 = vector.load %arg3[%c3_24, %c0_25, %c0_26] : memref<5x128x128xbf16, #tpu.memory_space<vmem>>, vector<1x128x128xbf16>
    %38 = vector.shape_cast %37 : vector<1x128x128xbf16> to vector<128x128xbf16>
    %cst_27 = arith.constant dense<0.000000e+00> : vector<8x128xf32>
    %39 = tpu.matmul %36, %38, %cst_27 {dimension_numbers = #tpu.dot_dimension_numbers<[1], [0], [0], [1], [0, 0, 1, 1], [], []>} : vector<8x128xbf16>, vector<128x128xbf16>, vector<8x128xf32> -> vector<8x128xf32>
    %c4 = arith.constant 4 : index
    %c0_28 = arith.constant 0 : index
    %40 = vector.load %arg4[%c4, %c0_28] : memref<8x128xf32, #tpu.memory_space<vmem>>, vector<1x128xf32>
    %41 = vector.broadcast %40 : vector<1x128xf32> to vector<8x128xf32>
    %42 = arith.addf %39, %41 : vector<8x128xf32>
    %cst_29 = arith.constant 0.000000e+00 : f32
    %43 = vector.broadcast %cst_29 : f32 to vector<8x128xf32>
    %44 = arith.maximumf %42, %43 : vector<8x128xf32>
    %45 = arith.truncf %44 : vector<8x128xf32> to vector<8x128xbf16>
    %c4_30 = arith.constant 4 : index
    %c0_31 = arith.constant 0 : index
    %c0_32 = arith.constant 0 : index
    %46 = vector.load %arg3[%c4_30, %c0_31, %c0_32] : memref<5x128x128xbf16, #tpu.memory_space<vmem>>, vector<1x128x128xbf16>
    %47 = vector.shape_cast %46 : vector<1x128x128xbf16> to vector<128x128xbf16>
    %cst_33 = arith.constant dense<0.000000e+00> : vector<8x128xf32>
    %48 = tpu.matmul %45, %47, %cst_33 {dimension_numbers = #tpu.dot_dimension_numbers<[1], [0], [0], [1], [0, 0, 1, 1], [], []>} : vector<8x128xbf16>, vector<128x128xbf16>, vector<8x128xf32> -> vector<8x128xf32>
    %c5 = arith.constant 5 : index
    %c0_34 = arith.constant 0 : index
    %49 = vector.load %arg4[%c5, %c0_34] : memref<8x128xf32, #tpu.memory_space<vmem>>, vector<1x128xf32>
    %50 = vector.broadcast %49 : vector<1x128xf32> to vector<8x128xf32>
    %51 = arith.addf %48, %50 : vector<8x128xf32>
    %c0_35 = arith.constant 0 : index
    %c0_36 = arith.constant 0 : index
    %52 = vector.load %arg5[%c0_35, %c0_36] : memref<8x128xf32, #tpu.memory_space<vmem>>, vector<8x128xf32>
    tpu.vector_store %arg5[%c0_35, %c0_36], %51 {strides = array<i32>} : memref<8x128xf32, #tpu.memory_space<vmem>>, vector<8x128xf32>,
    return
  }
  func.func @transform_0(%arg0: i32) -> (i32, i32) {
    %c0_i32 = arith.constant 0 : i32
    %c0_i32_0 = arith.constant 0 : i32
    return %arg0, %c0_i32 : i32, i32
  }
  func.func @transform_1(%arg0: i32) -> (i32, i32) {
    %c0_i32 = arith.constant 0 : i32
    %c0_i32_0 = arith.constant 0 : i32
    %c0_i32_1 = arith.constant 0 : i32
    return %c0_i32, %c0_i32_0 : i32, i32
  }
  func.func @transform_2(%arg0: i32) -> (i32, i32, i32) {
    %c0_i32 = arith.constant 0 : i32
    %c0_i32_0 = arith.constant 0 : i32
    %c0_i32_1 = arith.constant 0 : i32
    %c0_i32_2 = arith.constant 0 : i32
    return %c0_i32, %c0_i32_0, %c0_i32_1 : i32, i32, i32
  }
  func.func @transform_3(%arg0: i32) -> (i32, i32) {
    %c0_i32 = arith.constant 0 : i32
    %c0_i32_0 = arith.constant 0 : i32
    %c0_i32_1 = arith.constant 0 : i32
    return %c0_i32, %c0_i32_0 : i32, i32
  }
  func.func @transform_4(%arg0: i32) -> (i32, i32) {
    %c0_i32 = arith.constant 0 : i32
    %c0_i32_0 = arith.constant 0 : i32
    return %arg0, %c0_i32 : i32, i32
  }
}

module attributes {stable_mosaic.version = 11 : i64} {
  func.func @mlp_kernel(%arg0: i32, %arg1: memref<8x32xf32, #tpu.memory_space<vmem>>, %arg2: memref<32x128xbf16, #tpu.memory_space<vmem>>, %arg3: memref<5x128x128xbf16, #tpu.memory_space<vmem>>, %arg4: memref<8x128xf32, #tpu.memory_space<vmem>>, %arg5: memref<8x128xf32, #tpu.memory_space<vmem>>) attributes {dimension_semantics = [#tpu.dimension_semantics<parallel>], iteration_bounds = array<i64: 1>, scalar_prefetch = 0 : i64, scratch_operands = 0 : i64, tpu.core_type = #tpu.core_type<tc>, window_params = [{transform_indices = @transform_0, window_bounds = array<i64: 8, 32>}, {pipeline_mode = #tpu.pipeline_mode<synchronous>, transform_indices = @transform_1, window_bounds = array<i64: 32, 128>}, {pipeline_mode = #tpu.pipeline_mode<synchronous>, transform_indices = @transform_2, window_bounds = array<i64: 5, 128, 128>}, {pipeline_mode = #tpu.pipeline_mode<synchronous>, transform_indices = @transform_3, window_bounds = array<i64: 8, 128>}, {transform_indices = @transform_4, window_bounds = array<i64: 8, 128>}]} {
    %c0 = arith.constant 0 : index
    %c0_0 = arith.constant 0 : index
    %0 = vector.load %arg1[%c0, %c0_0] : memref<8x32xf32, #tpu.memory_space<vmem>>, vector<8x32xf32>
    %1 = arith.truncf %0 : vector<8x32xf32> to vector<8x32xbf16>
    %c0_1 = arith.constant 0 : index
    %c0_2 = arith.constant 0 : index
    %2 = vector.load %arg2[%c0_1, %c0_2] : memref<32x128xbf16, #tpu.memory_space<vmem>>, vector<32x128xbf16>
    %cst = arith.constant dense<0.000000e+00> : vector<8x128xf32>
    %3 = tpu.matmul %1, %2, %cst {dimension_numbers = #tpu.dot_dimension_numbers<[1], [0], [0], [1], [0, 0, 1, 1], [], []>} : vector<8x32xbf16>, vector<32x128xbf16>, vector<8x128xf32> -> vector<8x128xf32>
    %c0_3 = arith.constant 0 : index
    %c0_4 = arith.constant 0 : index
    %4 = vector.load %arg4[%c0_3, %c0_4] : memref<8x128xf32, #tpu.memory_space<vmem>>, vector<1x128xf32>
    %5 = vector.broadcast %4 : vector<1x128xf32> to vector<8x128xf32>
    %6 = arith.addf %3, %5 : vector<8x128xf32>
    %cst_5 = arith.constant 0.000000e+00 : f32
    %7 = vector.broadcast %cst_5 : f32 to vector<8x128xf32>
    %8 = arith.maximumf %6, %7 : vector<8x128xf32>
    %9 = arith.truncf %8 : vector<8x128xf32> to vector<8x128xbf16>
    %c0_6 = arith.constant 0 : index
    %c0_7 = arith.constant 0 : index
    %c0_8 = arith.constant 0 : index
    %10 = vector.load %arg3[%c0_6, %c0_7, %c0_8] : memref<5x128x128xbf16, #tpu.memory_space<vmem>>, vector<1x128x128xbf16>
    %11 = vector.shape_cast %10 : vector<1x128x128xbf16> to vector<128x128xbf16>
    %cst_9 = arith.constant dense<0.000000e+00> : vector<8x128xf32>
    %12 = tpu.matmul %9, %11, %cst_9 {dimension_numbers = #tpu.dot_dimension_numbers<[1], [0], [0], [1], [0, 0, 1, 1], [], []>} : vector<8x128xbf16>, vector<128x128xbf16>, vector<8x128xf32> -> vector<8x128xf32>
    %c1 = arith.constant 1 : index
    %c0_10 = arith.constant 0 : index
    %13 = vector.load %arg4[%c1, %c0_10] : memref<8x128xf32, #tpu.memory_space<vmem>>, vector<1x128xf32>
    %14 = vector.broadcast %13 : vector<1x128xf32> to vector<8x128xf32>
    %15 = arith.addf %12, %14 : vector<8x128xf32>
    %cst_11 = arith.constant 0.000000e+00 : f32
    %16 = vector.broadcast %cst_11 : f32 to vector<8x128xf32>
    %17 = arith.maximumf %15, %16 : vector<8x128xf32>
    %18 = arith.truncf %17 : vector<8x128xf32> to vector<8x128xbf16>
    %c1_12 = arith.constant 1 : index
    %c0_13 = arith.constant 0 : index
    %c0_14 = arith.constant 0 : index
    %19 = vector.load %arg3[%c1_12, %c0_13, %c0_14] : memref<5x128x128xbf16, #tpu.memory_space<vmem>>, vector<1x128x128xbf16>
    %20 = vector.shape_cast %19 : vector<1x128x128xbf16> to vector<128x128xbf16>
    %cst_15 = arith.constant dense<0.000000e+00> : vector<8x128xf32>
    %21 = tpu.matmul %18, %20, %cst_15 {dimension_numbers = #tpu.dot_dimension_numbers<[1], [0], [0], [1], [0, 0, 1, 1], [], []>} : vector<8x128xbf16>, vector<128x128xbf16>, vector<8x128xf32> -> vector<8x128xf32>
    %c2 = arith.constant 2 : index
    %c0_16 = arith.constant 0 : index
    %22 = vector.load %arg4[%c2, %c0_16] : memref<8x128xf32, #tpu.memory_space<vmem>>, vector<1x128xf32>
    %23 = vector.broadcast %22 : vector<1x128xf32> to vector<8x128xf32>
    %24 = arith.addf %21, %23 : vector<8x128xf32>
    %cst_17 = arith.constant 0.000000e+00 : f32
    %25 = vector.broadcast %cst_17 : f32 to vector<8x128xf32>
    %26 = arith.maximumf %24, %25 : vector<8x128xf32>
    %27 = arith.truncf %26 : vector<8x128xf32> to vector<8x128xbf16>
    %c2_18 = arith.constant 2 : index
    %c0_19 = arith.constant 0 : index
    %c0_20 = arith.constant 0 : index
    %28 = vector.load %arg3[%c2_18, %c0_19, %c0_20] : memref<5x128x128xbf16, #tpu.memory_space<vmem>>, vector<1x128x128xbf16>
    %29 = vector.shape_cast %28 : vector<1x128x128xbf16> to vector<128x128xbf16>
    %cst_21 = arith.constant dense<0.000000e+00> : vector<8x128xf32>
    %30 = tpu.matmul %27, %29, %cst_21 {dimension_numbers = #tpu.dot_dimension_numbers<[1], [0], [0], [1], [0, 0, 1, 1], [], []>} : vector<8x128xbf16>, vector<128x128xbf16>, vector<8x128xf32> -> vector<8x128xf32>
    %c3 = arith.constant 3 : index
    %c0_22 = arith.constant 0 : index
    %31 = vector.load %arg4[%c3, %c0_22] : memref<8x128xf32, #tpu.memory_space<vmem>>, vector<1x128xf32>
    %32 = vector.broadcast %31 : vector<1x128xf32> to vector<8x128xf32>
    %33 = arith.addf %30, %32 : vector<8x128xf32>
    %cst_23 = arith.constant 0.000000e+00 : f32
    %34 = vector.broadcast %cst_23 : f32 to vector<8x128xf32>
    %35 = arith.maximumf %33, %34 : vector<8x128xf32>
    %36 = arith.truncf %35 : vector<8x128xf32> to vector<8x128xbf16>
    %c3_24 = arith.constant 3 : index
    %c0_25 = arith.constant 0 : index
    %c0_26 = arith.constant 0 : index
    %37 = vector.load %arg3[%c3_24, %c0_25, %c0_26] : memref<5x128x128xbf16, #tpu.memory_space<vmem>>, vector<1x128x128xbf16>
    %38 = vector.shape_cast %37 : vector<1x128x128xbf16> to vector<128x128xbf16>
    %cst_27 = arith.constant dense<0.000000e+00> : vector<8x128xf32>
    %39 = tpu.matmul %36, %38, %cst_27 {dimension_numbers = #tpu.dot_dimension_numbers<[1], [0], [0], [1], [0, 0, 1, 1], [], []>} : vector<8x128xbf16>, vector<128x128xbf16>, vector<8x128xf32> -> vector<8x128xf32>
    %c4 = arith.constant 4 : index
    %c0_28 = arith.constant 0 : index
    %40 = vector.load %arg4[%c4, %c0_28] : memref<8x128xf32, #tpu.memory_space<vmem>>, vector<1x128xf32>
    %41 = vector.broadcast %40 : vector<1x128xf32> to vector<8x128xf32>
    %42 = arith.addf %39, %41 : vector<8x128xf32>
    %cst_29 = arith.constant 0.000000e+00 : f32
    %43 = vector.broadcast %cst_29 : f32 to vector<8x128xf32>
    %44 = arith.maximumf %42, %43 : vector<8x128xf32>
    %45 = arith.truncf %44 : vector<8x128xf32> to vector<8x128xbf16>
    %c4_30 = arith.constant 4 : index
    %c0_31 = arith.constant 0 : index
    %c0_32 = arith.constant 0 : index
    %46 = vector.load %arg3[%c4_30, %c0_31, %c0_32] : memref<5x128x128xbf16, #tpu.memory_space<vmem>>, vector<1x128x128xbf16>
    %47 = vector.shape_cast %46 : vector<1x128x128xbf16> to vector<128x128xbf16>
    %cst_33 = arith.constant dense<0.000000e+00> : vector<8x128xf32>
    %48 = tpu.matmul %45, %47, %cst_33 {dimension_numbers = #tpu.dot_dimension_numbers<[1], [0], [0], [1], [0, 0, 1, 1], [], []>} : vector<8x128xbf16>, vector<128x128xbf16>, vector<8x128xf32> -> vector<8x128xf32>
    %c5 = arith.constant 5 : index
    %c0_34 = arith.constant 0 : index
    %49 = vector.load %arg4[%c5, %c0_34] : memref<8x128xf32, #tpu.memory_space<vmem>>, vector<1x128xf32>
    %50 = vector.broadcast %49 : vector<1x128xf32> to vector<8x128xf32>
    %51 = arith.addf %48, %50 : vector<8x128xf32>
    %c0_35 = arith.constant 0 : index
    %c0_36 = arith.constant 0 : index
    %52 = vector.load %arg5[%c0_35, %c0_36] : memref<8x128xf32, #tpu.memory_space<vmem>>, vector<8x128xf32>
    tpu.vector_store %arg5[%c0_35, %c0_36], %51 {strides = array<i32>} : memref<8x128xf32, #tpu.memory_space<vmem>>, vector<8x128xf32>,
    return
  }
  func.func @transform_0(%arg0: i32) -> (i32, i32) {
    %c0_i32 = arith.constant 0 : i32
    %c0_i32_0 = arith.constant 0 : i32
    return %arg0, %c0_i32 : i32, i32
  }
  func.func @transform_1(%arg0: i32) -> (i32, i32) {
    %c0_i32 = arith.constant 0 : i32
    %c0_i32_0 = arith.constant 0 : i32
    %c0_i32_1 = arith.constant 0 : i32
    return %c0_i32, %c0_i32_0 : i32, i32
  }
  func.func @transform_2(%arg0: i32) -> (i32, i32, i32) {
    %c0_i32 = arith.constant 0 : i32
    %c0_i32_0 = arith.constant 0 : i32
    %c0_i32_1 = arith.constant 0 : i32
    %c0_i32_2 = arith.constant 0 : i32
    return %c0_i32, %c0_i32_0, %c0_i32_1 : i32, i32, i32
  }
  func.func @transform_3(%arg0: i32) -> (i32, i32) {
    %c0_i32 = arith.constant 0 : i32
    %c0_i32_0 = arith.constant 0 : i32
    %c0_i32_1 = arith.constant 0 : i32
    return %c0_i32, %c0_i32_0 : i32, i32
  }
  func.func @transform_4(%arg0: i32) -> (i32, i32) {
    %c0_i32 = arith.constant 0 : i32
    %c0_i32_0 = arith.constant 0 : i32
    return %arg0, %c0_i32 : i32, i32
  }
}

</mosaic_0001>

<llo_original>
// kernel: tpu_custom_call.1
$region0: #{tpu_custom_call.1}
  #allocation0 [shape = 'u32[]', space=smem, size = 0x4, offset = 0x4, fixed_abs, tag = 'smem constant byte address 0x4 - core index']
  #allocation1 [shape = 'u32[144,128]{1,0:T(1,128)}', space=vmem, size = 0x12000, scoped, tag = 'internal scratch']
  %s0 = inlined_call_operand.hbm [shape: f32[8,32], index: 0, kind: input, shape index: {}]
  %s1 = inlined_call_operand.hbm [shape: bf16[32,128], index: 1, kind: input, shape index: {}]
  %s2 = inlined_call_operand.hbm [shape: bf16[5,128,128], index: 2, kind: input, shape index: {}]
  %s3 = inlined_call_operand.hbm [shape: f32[8,128], index: 3, kind: input, shape index: {}]
  %s4 = inlined_call_operand.hbm [shape: f32[8,128], index: 4, kind: output, shape index: {}]
  %s5 = sld [smem:[#allocation0]]
  $region42: #{tpu_custom_call.1} parent=0
    _
  %s7 = ssub.s32 1, %s5
  %s8 = scalar_select 0, %s7, %s5
  $region1: #{tpu_custom_call.1} parent=0
    #allocation2 [shape = 'u8[4096]{0}', space=vmem, size = 0x1000, scoped, tag = 'input window, operand 0, single buffered']
    #allocation3 [shape = 's32[1]{0}', space=sflag, size = 0x4, scoped, tag = 'scoped memory for tpu_custom_call.1']
    #allocation4 [shape = 's32[1]{0}', space=sflag, size = 0x4, scoped, tag = 'scoped memory for tpu_custom_call.1']
    #allocation5 [shape = 'u8[8192]{0}', space=vmem, size = 0x2000, scoped, tag = 'input window, operand 1, single buffered']
    #allocation6 [shape = 's32[1]{0}', space=sflag, size = 0x4, scoped, tag = 'scoped memory for tpu_custom_call.1']
    #allocation7 [shape = 'u8[163840]{0}', space=vmem, size = 0x28000, scoped, tag = 'input window, operand 2, single buffered']
    #allocation8 [shape = 'u8[4096]{0}', space=vmem, size = 0x1000, scoped, tag = 'input window, operand 3, single buffered']
    #allocation9 [shape = 's32[1]{0}', space=sflag, size = 0x4, scoped, tag = 'scoped memory for tpu_custom_call.1']
    #allocation10 [shape = 'u8[4096]{0}', space=vmem, size = 0x1000, scoped, tag = 'output window, operand 0, single buffered']
    %9 = vsyncpa [#allocation3], 0
    %10 = vsyncpa [#allocation6], 0
    %11 = vsyncpa [#allocation9], 0
    %12 = vsyncpa [#allocation4], 0
    // Predicated region
    $region2: #{tpu_custom_call.1} parent=1 // pred_check
      _
    $region3: #{tpu_custom_call.1} parent=1 // pred_check_branch
      %14 = sbr.rel (0) target = $region5
    $region4: #{tpu_custom_call.1} parent=1 // pred_region
      %s16 = ssub.s32 128, 128
      %17 = vsyncadd [#allocation3], %s16
      %s19 = sshll.u32 [#allocation2], 4
      %s20 = int_to_ptr.vmem [resolvable:$true] %s19
      %22 = dma.hbm_to_vmem [thread:$0]  %s0, 128, %s20, [#allocation3]
    $region5: #{tpu_custom_call.1} parent=1 // pred_fallthru
      _
    // Predicated region
    $region6: #{tpu_custom_call.1} parent=1 // pred_check
      _
    $region7: #{tpu_custom_call.1} parent=1 // pred_check_branch
      %24 = sbr.rel (0) target = $region9
    $region8: #{tpu_custom_call.1} parent=1 // pred_region
      %s26 = ssub.s32 256, 256
      %27 = vsyncadd [#allocation6], %s26
      %s28 = sshll.u32 [#allocation5], 4
      %s29 = int_to_ptr.vmem [resolvable:$true] %s28
      %34 = dma.hbm_to_vmem [thread:$0]  %s1, 256, %s29, [#allocation6], 64, 64, 4
    $region9: #{tpu_custom_call.1} parent=1 // pred_fallthru
      _
    // Predicated region
    $region10: #{tpu_custom_call.1} parent=1 // pred_check
      _
    $region11: #{tpu_custom_call.1} parent=1 // pred_check_branch
      %36 = sbr.rel (0) target = $region13
    $region12: #{tpu_custom_call.1} parent=1 // pred_region
      %s38 = ssub.s32 5120, 5120
      %39 = vsyncadd [#allocation6], %s38
      %s40 = sshll.u32 [#allocation7], 4
      %s41 = int_to_ptr.vmem [resolvable:$true] %s40
      %46 = dma.hbm_to_vmem [thread:$0]  %s2, 5120, %s41, [#allocation6], 64, 64, 4
    $region13: #{tpu_custom_call.1} parent=1 // pred_fallthru
      _
    // Predicated region
    $region14: #{tpu_custom_call.1} parent=1 // pred_check
      _
    $region15: #{tpu_custom_call.1} parent=1 // pred_check_branch
      %48 = sbr.rel (0) target = $region17
    $region16: #{tpu_custom_call.1} parent=1 // pred_region
      %s50 = ssub.s32 128, 128
      %51 = vsyncadd [#allocation9], %s50
      %s53 = sshll.u32 [#allocation8], 4
      %s54 = int_to_ptr.vmem [resolvable:$true] %s53
      %56 = dma.hbm_to_vmem [thread:$0]  %s3, 128, %s54, [#allocation9]
    $region17: #{tpu_custom_call.1} parent=1 // pred_fallthru
      _
    // Predicated region
    $region18: #{tpu_custom_call.1} parent=1 // pred_check
      _
    $region19: #{tpu_custom_call.1} parent=1 // pred_check_branch
      %58 = sbr.rel (0) target = $region21
    $region20: #{tpu_custom_call.1} parent=1 // pred_region
      %59 = dma.done [#allocation3], 128
    $region21: #{tpu_custom_call.1} parent=1 // pred_fallthru
      _
    // Predicated region
    $region22: #{tpu_custom_call.1} parent=1 // pred_check
      _
    $region23: #{tpu_custom_call.1} parent=1 // pred_check_branch
      %61 = sbr.rel (0) target = $region25
    $region24: #{tpu_custom_call.1} parent=1 // pred_region
      %62 = dma.done [#allocation6], 256
    $region25: #{tpu_custom_call.1} parent=1 // pred_fallthru
      _
    // Predicated region
    $region26: #{tpu_custom_call.1} parent=1 // pred_check
      _
    $region27: #{tpu_custom_call.1} parent=1 // pred_check_branch
      %64 = sbr.rel (0) target = $region29
    $region28: #{tpu_custom_call.1} parent=1 // pred_region
      %65 = dma.done [#allocation6], 5120
    $region29: #{tpu_custom_call.1} parent=1 // pred_fallthru
      _
    // Predicated region
    $region30: #{tpu_custom_call.1} parent=1 // pred_check
      _
    $region31: #{tpu_custom_call.1} parent=1 // pred_check_branch
      %67 = sbr.rel (0) target = $region33
    $region32: #{tpu_custom_call.1} parent=1 // pred_region
      %68 = dma.done [#allocation9], 128
    $region33: #{tpu_custom_call.1} parent=1 // pred_fallthru
      _
    %v70 = vld [vmem:[#allocation2] sm:$0xff]
    %v71 = vpack.c.bf16 %v70, %v70
    %v72 = vld [vmem:[#allocation5] sm:$0xf]
    %v73 = vld [vmem:[#allocation5 + $0x4] sm:$0xf]
    %v74 = vld [vmem:[#allocation5 + $0x8] sm:$0xf]
    %v75 = vld [vmem:[#allocation5 + $0xc] sm:$0xf]
    %v76 = vld [vmem:[#allocation8] sm:$0x1]
    %v77 = vlaneseq
    %v78 = vshrl.u32 %v77, 7
    %v79 = vsub.s32 0, %v78
    %v80 = vrot.slane %v76, %v79
    %v85 = vunpack.c.l.b16 %v72
    %v86 = vunpack.c.l.b16 %v73
    %v87 = vunpack.c.l.b16 %v74
    %v88 = vunpack.c.l.b16 %v75
    %v89 = vpack.c.b16 %v86, %v85
    %v90 = vpack.c.b16 %v88, %v87
    %vm93 = vcmask 261120
    %v95 = vsel %vm93, %v71, 0
    %97 = vmatprep.subr.bf16.mxu0 0
    %98 = vmatpush1.bf16.msra.mxu0 0
    %99 = vmatprep.subr.bf16.mxu0 0
    %100 = vmatpush1.bf16.msra.mxu0 0
    %101 = vmatprep.subr.bf16.mxu0 0
    %102 = vmatpush1.bf16.msra.mxu0 0
    %103 = vmatprep.subr.bf16.mxu0 0
    %104 = vmatpush1.bf16.msra.mxu0 0
    %105 = vmatprep.subr.bf16.mxu0 0
    %106 = vmatpush1.bf16.msra.mxu0 0
    %107 = vmatprep.subr.bf16.mxu0 0
    %108 = vmatpush1.bf16.msra.mxu0 0
    %109 = vmatprep.subr.bf16.mxu0 0
    %110 = vmatpush1.bf16.msra.mxu0 %v90
    %111 = vmatprep.subr.bf16.mxu0 0
    %112 = vmatpush1.bf16.msra.mxu0 %v89
    %113 = vmatprep.subr.bf16.mxu0 0
    %114 = vmatpush2.bf16.msra.mxu0 0
    %115 = vmatprep.subr.bf16.mxu0 0
    %116 = vmatpush2.bf16.msra.mxu0 0
    %117 = vmatprep.subr.bf16.mxu0 0
    %118 = vmatpush2.bf16.msra.mxu0 0
    %119 = vmatprep.subr.bf16.mxu0 0
    %120 = vmatpush2.bf16.msra.mxu0 0
    %121 = vmatprep.subr.bf16.mxu0 0
    %122 = vmatpush2.bf16.msra.mxu0 0
    %123 = vmatprep.subr.bf16.mxu0 0
    %124 = vmatpush2.bf16.msra.mxu0 0
    %125 = vmatprep.subr.bf16.mxu0 0
    %126 = vmatpush2.bf16.msra.mxu0 0
    %127 = vmatprep.subr.bf16.mxu0 0
    %128 = vmatpush2.bf16.msra.mxu0 0
    %129 = vmatprep.mubr.bf16.mxu0 0
    %130 = vmatmul.mubr.bf16.gmra.mxu0 %v95
    %v131 = vpop.f32.mrf.mxu0
    %v132 = vadd.f32 %v80, %v131
    %v133 = vpop.f32.mrf.mxu0
    %v134 = vpop.f32.mrf.mxu0
    %v135 = vpop.f32.mrf.mxu0
    %136 = vdwg.mxu0
    %v137 = vmax.f32 %v132, 0.0
    %v138 = vpack.c.bf16 %v137, %v137
    %v139 = vld [vmem:[#allocation7] sm:$0xf]
    %v140 = vld [vmem:[#allocation7 + $0x4] sm:$0xf]
    %v141 = vld [vmem:[#allocation7 + $0x8] sm:$0xf]
    %v142 = vld [vmem:[#allocation7 + $0xc] sm:$0xf]
    %v143 = vld [vmem:[#allocation7 + $0x10] sm:$0xf]
    %v144 = vld [vmem:[#allocation7 + $0x14] sm:$0xf]
    %v145 = vld [vmem:[#allocation7 + $0x18] sm:$0xf]
    %v146 = vld [vmem:[#allocation7 + $0x1c] sm:$0xf]
    %v147 = vld [vmem:[#allocation7 + $0x20] sm:$0xf]
    %v148 = vld [vmem:[#allocation7 + $0x24] sm:$0xf]
    %v149 = vld [vmem:[#allocation7 + $0x28] sm:$0xf]
    %v150 = vld [vmem:[#allocation7 + $0x2c] sm:$0xf]
    %v151 = vld [vmem:[#allocation7 + $0x30] sm:$0xf]
    %v152 = vld [vmem:[#allocation7 + $0x34] sm:$0xf]
    %v153 = vld [vmem:[#allocation7 + $0x38] sm:$0xf]
    %v154 = vld [vmem:[#allocation7 + $0x3c] sm:$0xf]
    %v155 = vld [vmem:[#allocation8 + $0x1] sm:$0x1]
    %v156 = vlaneseq
    %v157 = vshrl.u32 %v156, 7
    %v158 = vsub.s32 0, %v157
    %v159 = vrot.slane %v155, %v158
    %v176 = vunpack.c.l.b16 %v139
    %v177 = vunpack.c.l.b16 %v140
    %v178 = vunpack.c.l.b16 %v141
    %v179 = vunpack.c.l.b16 %v142
    %v180 = vunpack.c.l.b16 %v143
    %v181 = vunpack.c.l.b16 %v144
    %v182 = vunpack.c.l.b16 %v145
    %v183 = vunpack.c.l.b16 %v146
    %v184 = vunpack.c.l.b16 %v147
    %v185 = vunpack.c.l.b16 %v148
    %v186 = vunpack.c.l.b16 %v149
    %v187 = vunpack.c.l.b16 %v150
    %v188 = vunpack.c.l.b16 %v151
    %v189 = vunpack.c.l.b16 %v152
    %v190 = vunpack.c.l.b16 %v153
    %v191 = vunpack.c.l.b16 %v154
    %v192 = vpack.c.b16 %v177, %v176
    %v193 = vpack.c.b16 %v179, %v178
    %v194 = vpack.c.b16 %v181, %v180
    %v195 = vpack.c.b16 %v183, %v182
    %v196 = vpack.c.b16 %v185, %v184
    %v197 = vpack.c.b16 %v187, %v186
    %v198 = vpack.c.b16 %v189, %v188
    %v199 = vpack.c.b16 %v191, %v190
    %208 = vmatprep.subr.bf16.mxu0 0
    %209 = vmatpush1.bf16.msra.mxu0 %v199
    %210 = vmatprep.subr.bf16.mxu0 0
    %211 = vmatpush1.bf16.msra.mxu0 %v198
    %212 = vmatprep.subr.bf16.mxu0 0
    %213 = vmatpush1.bf16.msra.mxu0 %v197
    %214 = vmatprep.subr.bf16.mxu0 0
    %215 = vmatpush1.bf16.msra.mxu0 %v196
    %216 = vmatprep.subr.bf16.mxu0 0
    %217 = vmatpush1.bf16.msra.mxu0 %v195
    %218 = vmatprep.subr.bf16.mxu0 0
    %219 = vmatpush1.bf16.msra.mxu0 %v194
    %220 = vmatprep.subr.bf16.mxu0 0
    %221 = vmatpush1.bf16.msra.mxu0 %v193
    %222 = vmatprep.subr.bf16.mxu0 0
    %223 = vmatpush1.bf16.msra.mxu0 %v192
    %224 = vmatprep.subr.bf16.mxu0 0
    %225 = vmatpush2.bf16.msra.mxu0 0
    %226 = vmatprep.subr.bf16.mxu0 0
    %227 = vmatpush2.bf16.msra.mxu0 0
    %228 = vmatprep.subr.bf16.mxu0 0
    %229 = vmatpush2.bf16.msra.mxu0 0
    %230 = vmatprep.subr.bf16.mxu0 0
    %231 = vmatpush2.bf16.msra.mxu0 0
    %232 = vmatprep.subr.bf16.mxu0 0
    %233 = vmatpush2.bf16.msra.mxu0 0
    %234 = vmatprep.subr.bf16.mxu0 0
    %235 = vmatpush2.bf16.msra.mxu0 0
    %236 = vmatprep.subr.bf16.mxu0 0
    %237 = vmatpush2.bf16.msra.mxu0 0
    %238 = vmatprep.subr.bf16.mxu0 0
    %239 = vmatpush2.bf16.msra.mxu0 0
    %240 = vmatprep.mubr.bf16.mxu0 0
    %241 = vmatmul.mubr.bf16.gmra.mxu0 %v138
    %v242 = vpop.f32.mrf.mxu0
    %v243 = vadd.f32 %v159, %v242
    %v244 = vpop.f32.mrf.mxu0
    %v245 = vpop.f32.mrf.mxu0
    %v246 = vpop.f32.mrf.mxu0
    %247 = vdwg.mxu0
    %v248 = vmax.f32 %v243, 0.0
    %v249 = vpack.c.bf16 %v248, %v248
    %s250 = scalar_lea.vmem [#allocation7], 64
    %v251 = vld [vmem:[%s250] sm:$0xf]
    %v252 = vld [vmem:[%s250 + $0x4] sm:$0xf]
    %v253 = vld [vmem:[%s250 + $0x8] sm:$0xf]
    %v254 = vld [vmem:[%s250 + $0xc] sm:$0xf]
    %v255 = vld [vmem:[%s250 + $0x10] sm:$0xf]
    %v256 = vld [vmem:[%s250 + $0x14] sm:$0xf]
    %v257 = vld [vmem:[%s250 + $0x18] sm:$0xf]
    %v258 = vld [vmem:[%s250 + $0x1c] sm:$0xf]
    %v259 = vld [vmem:[%s250 + $0x20] sm:$0xf]
    %v260 = vld [vmem:[%s250 + $0x24] sm:$0xf]
    %v261 = vld [vmem:[%s250 + $0x28] sm:$0xf]
    %v262 = vld [vmem:[%s250 + $0x2c] sm:$0xf]
    %v263 = vld [vmem:[%s250 + $0x30] sm:$0xf]
    %v264 = vld [vmem:[%s250 + $0x34] sm:$0xf]
    %v265 = vld [vmem:[%s250 + $0x38] sm:$0xf]
    %v266 = vld [vmem:[%s250 + $0x3c] sm:$0xf]
    %v267 = vld [vmem:[#allocation8 + $0x2] sm:$0x1]
    %v268 = vlaneseq
    %v269 = vshrl.u32 %v268, 7
    %v270 = vsub.s32 0, %v269
    %v271 = vrot.slane %v267, %v270
    %v288 = vunpack.c.l.b16 %v251
    %v289 = vunpack.c.l.b16 %v252
    %v290 = vunpack.c.l.b16 %v253
    %v291 = vunpack.c.l.b16 %v254
    %v292 = vunpack.c.l.b16 %v255
    %v293 = vunpack.c.l.b16 %v256
    %v294 = vunpack.c.l.b16 %v257
    %v295 = vunpack.c.l.b16 %v258
    %v296 = vunpack.c.l.b16 %v259
    %v297 = vunpack.c.l.b16 %v260
    %v298 = vunpack.c.l.b16 %v261
    %v299 = vunpack.c.l.b16 %v262
    %v300 = vunpack.c.l.b16 %v263
    %v301 = vunpack.c.l.b16 %v264
    %v302 = vunpack.c.l.b16 %v265
    %v303 = vunpack.c.l.b16 %v266
    %v304 = vpack.c.b16 %v289, %v288
    %v305 = vpack.c.b16 %v291, %v290
    %v306 = vpack.c.b16 %v293, %v292
    %v307 = vpack.c.b16 %v295, %v294
    %v308 = vpack.c.b16 %v297, %v296
    %v309 = vpack.c.b16 %v299, %v298
    %v310 = vpack.c.b16 %v301, %v300
    %v311 = vpack.c.b16 %v303, %v302
    %320 = vmatprep.subr.bf16.mxu0 0
    %321 = vmatpush1.bf16.msra.mxu0 %v311
    %322 = vmatprep.subr.bf16.mxu0 0
    %323 = vmatpush1.bf16.msra.mxu0 %v310
    %324 = vmatprep.subr.bf16.mxu0 0
    %325 = vmatpush1.bf16.msra.mxu0 %v309
    %326 = vmatprep.subr.bf16.mxu0 0
    %327 = vmatpush1.bf16.msra.mxu0 %v308
    %328 = vmatprep.subr.bf16.mxu0 0
    %329 = vmatpush1.bf16.msra.mxu0 %v307
    %330 = vmatprep.subr.bf16.mxu0 0
    %331 = vmatpush1.bf16.msra.mxu0 %v306
    %332 = vmatprep.subr.bf16.mxu0 0
    %333 = vmatpush1.bf16.msra.mxu0 %v305
    %334 = vmatprep.subr.bf16.mxu0 0
    %335 = vmatpush1.bf16.msra.mxu0 %v304
    %336 = vmatprep.subr.bf16.mxu0 0
    %337 = vmatpush2.bf16.msra.mxu0 0
    %338 = vmatprep.subr.bf16.mxu0 0
    %339 = vmatpush2.bf16.msra.mxu0 0
    %340 = vmatprep.subr.bf16.mxu0 0
    %341 = vmatpush2.bf16.msra.mxu0 0
    %342 = vmatprep.subr.bf16.mxu0 0
    %343 = vmatpush2.bf16.msra.mxu0 0
    %344 = vmatprep.subr.bf16.mxu0 0
    %345 = vmatpush2.bf16.msra.mxu0 0
    %346 = vmatprep.subr.bf16.mxu0 0
    %347 = vmatpush2.bf16.msra.mxu0 0
    %348 = vmatprep.subr.bf16.mxu0 0
    %349 = vmatpush2.bf16.msra.mxu0 0
    %350 = vmatprep.subr.bf16.mxu0 0
    %351 = vmatpush2.bf16.msra.mxu0 0
    %352 = vmatprep.mubr.bf16.mxu0 0
    %353 = vmatmul.mubr.bf16.gmra.mxu0 %v249
    %v354 = vpop.f32.mrf.mxu0
    %v355 = vadd.f32 %v271, %v354
    %v356 = vpop.f32.mrf.mxu0
    %v357 = vpop.f32.mrf.mxu0
    %v358 = vpop.f32.mrf.mxu0
    %359 = vdwg.mxu0
    %v360 = vmax.f32 %v355, 0.0
    %v361 = vpack.c.bf16 %v360, %v360
    %s362 = scalar_lea.vmem [#allocation7], 128
    %v363 = vld [vmem:[%s362] sm:$0xf]
    %v364 = vld [vmem:[%s362 + $0x4] sm:$0xf]
    %v365 = vld [vmem:[%s362 + $0x8] sm:$0xf]
    %v366 = vld [vmem:[%s362 + $0xc] sm:$0xf]
    %v367 = vld [vmem:[%s362 + $0x10] sm:$0xf]
    %v368 = vld [vmem:[%s362 + $0x14] sm:$0xf]
    %v369 = vld [vmem:[%s362 + $0x18] sm:$0xf]
    %v370 = vld [vmem:[%s362 + $0x1c] sm:$0xf]
    %v371 = vld [vmem:[%s362 + $0x20] sm:$0xf]
    %v372 = vld [vmem:[%s362 + $0x24] sm:$0xf]
    %v373 = vld [vmem:[%s362 + $0x28] sm:$0xf]
    %v374 = vld [vmem:[%s362 + $0x2c] sm:$0xf]
    %v375 = vld [vmem:[%s362 + $0x30] sm:$0xf]
    %v376 = vld [vmem:[%s362 + $0x34] sm:$0xf]
    %v377 = vld [vmem:[%s362 + $0x38] sm:$0xf]
    %v378 = vld [vmem:[%s362 + $0x3c] sm:$0xf]
    %v379 = vld [vmem:[#allocation8 + $0x3] sm:$0x1]
    %v380 = vlaneseq
    %v381 = vshrl.u32 %v380, 7
    %v382 = vsub.s32 0, %v381
    %v383 = vrot.slane %v379, %v382
    %v400 = vunpack.c.l.b16 %v363
    %v401 = vunpack.c.l.b16 %v364
    %v402 = vunpack.c.l.b16 %v365
    %v403 = vunpack.c.l.b16 %v366
    %v404 = vunpack.c.l.b16 %v367
    %v405 = vunpack.c.l.b16 %v368
    %v406 = vunpack.c.l.b16 %v369
    %v407 = vunpack.c.l.b16 %v370
    %v408 = vunpack.c.l.b16 %v371
    %v409 = vunpack.c.l.b16 %v372
    %v410 = vunpack.c.l.b16 %v373
    %v411 = vunpack.c.l.b16 %v374
    %v412 = vunpack.c.l.b16 %v375
    %v413 = vunpack.c.l.b16 %v376
    %v414 = vunpack.c.l.b16 %v377
    %v415 = vunpack.c.l.b16 %v378
    %v416 = vpack.c.b16 %v401, %v400
    %v417 = vpack.c.b16 %v403, %v402
    %v418 = vpack.c.b16 %v405, %v404
    %v419 = vpack.c.b16 %v407, %v406
    %v420 = vpack.c.b16 %v409, %v408
    %v421 = vpack.c.b16 %v411, %v410
    %v422 = vpack.c.b16 %v413, %v412
    %v423 = vpack.c.b16 %v415, %v414
    %432 = vmatprep.subr.bf16.mxu0 0
    %433 = vmatpush1.bf16.msra.mxu0 %v423
    %434 = vmatprep.subr.bf16.mxu0 0
    %435 = vmatpush1.bf16.msra.mxu0 %v422
    %436 = vmatprep.subr.bf16.mxu0 0
    %437 = vmatpush1.bf16.msra.mxu0 %v421
    %438 = vmatprep.subr.bf16.mxu0 0
    %439 = vmatpush1.bf16.msra.mxu0 %v420
    %440 = vmatprep.subr.bf16.mxu0 0
    %441 = vmatpush1.bf16.msra.mxu0 %v419
    %442 = vmatprep.subr.bf16.mxu0 0
    %443 = vmatpush1.bf16.msra.mxu0 %v418
    %444 = vmatprep.subr.bf16.mxu0 0
    %445 = vmatpush1.bf16.msra.mxu0 %v417
    %446 = vmatprep.subr.bf16.mxu0 0
    %447 = vmatpush1.bf16.msra.mxu0 %v416
    %448 = vmatprep.subr.bf16.mxu0 0
    %449 = vmatpush2.bf16.msra.mxu0 0
    %450 = vmatprep.subr.bf16.mxu0 0
    %451 = vmatpush2.bf16.msra.mxu0 0
    %452 = vmatprep.subr.bf16.mxu0 0
    %453 = vmatpush2.bf16.msra.mxu0 0
    %454 = vmatprep.subr.bf16.mxu0 0
    %455 = vmatpush2.bf16.msra.mxu0 0
    %456 = vmatprep.subr.bf16.mxu0 0
    %457 = vmatpush2.bf16.msra.mxu0 0
    %458 = vmatprep.subr.bf16.mxu0 0
    %459 = vmatpush2.bf16.msra.mxu0 0
    %460 = vmatprep.subr.bf16.mxu0 0
    %461 = vmatpush2.bf16.msra.mxu0 0
    %462 = vmatprep.subr.bf16.mxu0 0
    %463 = vmatpush2.bf16.msra.mxu0 0
    %464 = vmatprep.mubr.bf16.mxu0 0
    %465 = vmatmul.mubr.bf16.gmra.mxu0 %v361
    %v466 = vpop.f32.mrf.mxu0
    %v467 = vadd.f32 %v383, %v466
    %v468 = vpop.f32.mrf.mxu0
    %v469 = vpop.f32.mrf.mxu0
    %v470 = vpop.f32.mrf.mxu0
    %471 = vdwg.mxu0
    %v472 = vmax.f32 %v467, 0.0
    %v473 = vpack.c.bf16 %v472, %v472
    %s474 = scalar_lea.vmem [#allocation7], 192
    %v475 = vld [vmem:[%s474] sm:$0xf]
    %v476 = vld [vmem:[%s474 + $0x4] sm:$0xf]
    %v477 = vld [vmem:[%s474 + $0x8] sm:$0xf]
    %v478 = vld [vmem:[%s474 + $0xc] sm:$0xf]
    %v479 = vld [vmem:[%s474 + $0x10] sm:$0xf]
    %v480 = vld [vmem:[%s474 + $0x14] sm:$0xf]
    %v481 = vld [vmem:[%s474 + $0x18] sm:$0xf]
    %v482 = vld [vmem:[%s474 + $0x1c] sm:$0xf]
    %v483 = vld [vmem:[%s474 + $0x20] sm:$0xf]
    %v484 = vld [vmem:[%s474 + $0x24] sm:$0xf]
    %v485 = vld [vmem:[%s474 + $0x28] sm:$0xf]
    %v486 = vld [vmem:[%s474 + $0x2c] sm:$0xf]
    %v487 = vld [vmem:[%s474 + $0x30] sm:$0xf]
    %v488 = vld [vmem:[%s474 + $0x34] sm:$0xf]
    %v489 = vld [vmem:[%s474 + $0x38] sm:$0xf]
    %v490 = vld [vmem:[%s474 + $0x3c] sm:$0xf]
    %v491 = vld [vmem:[#allocation8 + $0x4] sm:$0x1]
    %v492 = vlaneseq
    %v493 = vshrl.u32 %v492, 7
    %v494 = vsub.s32 0, %v493
    %v495 = vrot.slane %v491, %v494
    %v512 = vunpack.c.l.b16 %v475
    %v513 = vunpack.c.l.b16 %v476
    %v514 = vunpack.c.l.b16 %v477
    %v515 = vunpack.c.l.b16 %v478
    %v516 = vunpack.c.l.b16 %v479
    %v517 = vunpack.c.l.b16 %v480
    %v518 = vunpack.c.l.b16 %v481
    %v519 = vunpack.c.l.b16 %v482
    %v520 = vunpack.c.l.b16 %v483
    %v521 = vunpack.c.l.b16 %v484
    %v522 = vunpack.c.l.b16 %v485
    %v523 = vunpack.c.l.b16 %v486
    %v524 = vunpack.c.l.b16 %v487
    %v525 = vunpack.c.l.b16 %v488
    %v526 = vunpack.c.l.b16 %v489
    %v527 = vunpack.c.l.b16 %v490
    %v528 = vpack.c.b16 %v513, %v512
    %v529 = vpack.c.b16 %v515, %v514
    %v530 = vpack.c.b16 %v517, %v516
    %v531 = vpack.c.b16 %v519, %v518
    %v532 = vpack.c.b16 %v521, %v520
    %v533 = vpack.c.b16 %v523, %v522
    %v534 = vpack.c.b16 %v525, %v524
    %v535 = vpack.c.b16 %v527, %v526
    %544 = vmatprep.subr.bf16.mxu0 0
    %545 = vmatpush1.bf16.msra.mxu0 %v535
    %546 = vmatprep.subr.bf16.mxu0 0
    %547 = vmatpush1.bf16.msra.mxu0 %v534
    %548 = vmatprep.subr.bf16.mxu0 0
    %549 = vmatpush1.bf16.msra.mxu0 %v533
    %550 = vmatprep.subr.bf16.mxu0 0
    %551 = vmatpush1.bf16.msra.mxu0 %v532
    %552 = vmatprep.subr.bf16.mxu0 0
    %553 = vmatpush1.bf16.msra.mxu0 %v531
    %554 = vmatprep.subr.bf16.mxu0 0
    %555 = vmatpush1.bf16.msra.mxu0 %v530
    %556 = vmatprep.subr.bf16.mxu0 0
    %557 = vmatpush1.bf16.msra.mxu0 %v529
    %558 = vmatprep.subr.bf16.mxu0 0
    %559 = vmatpush1.bf16.msra.mxu0 %v528
    %560 = vmatprep.subr.bf16.mxu0 0
    %561 = vmatpush2.bf16.msra.mxu0 0
    %562 = vmatprep.subr.bf16.mxu0 0
    %563 = vmatpush2.bf16.msra.mxu0 0
    %564 = vmatprep.subr.bf16.mxu0 0
    %565 = vmatpush2.bf16.msra.mxu0 0
    %566 = vmatprep.subr.bf16.mxu0 0
    %567 = vmatpush2.bf16.msra.mxu0 0
    %568 = vmatprep.subr.bf16.mxu0 0
    %569 = vmatpush2.bf16.msra.mxu0 0
    %570 = vmatprep.subr.bf16.mxu0 0
    %571 = vmatpush2.bf16.msra.mxu0 0
    %572 = vmatprep.subr.bf16.mxu0 0
    %573 = vmatpush2.bf16.msra.mxu0 0
    %574 = vmatprep.subr.bf16.mxu0 0
    %575 = vmatpush2.bf16.msra.mxu0 0
    %576 = vmatprep.mubr.bf16.mxu0 0
    %577 = vmatmul.mubr.bf16.gmra.mxu0 %v473
    %v578 = vpop.f32.mrf.mxu0
    %v579 = vadd.f32 %v495, %v578
    %v580 = vpop.f32.mrf.mxu0
    %v581 = vpop.f32.mrf.mxu0
    %v582 = vpop.f32.mrf.mxu0
    %583 = vdwg.mxu0
    %v584 = vmax.f32 %v579, 0.0
    %v585 = vpack.c.bf16 %v584, %v584
    %s586 = scalar_lea.vmem [#allocation7], 256
    %v587 = vld [vmem:[%s586] sm:$0xf]
    %v588 = vld [vmem:[%s586 + $0x4] sm:$0xf]
    %v589 = vld [vmem:[%s586 + $0x8] sm:$0xf]
    %v590 = vld [vmem:[%s586 + $0xc] sm:$0xf]
    %v591 = vld [vmem:[%s586 + $0x10] sm:$0xf]
    %v592 = vld [vmem:[%s586 + $0x14] sm:$0xf]
    %v593 = vld [vmem:[%s586 + $0x18] sm:$0xf]
    %v594 = vld [vmem:[%s586 + $0x1c] sm:$0xf]
    %v595 = vld [vmem:[%s586 + $0x20] sm:$0xf]
    %v596 = vld [vmem:[%s586 + $0x24] sm:$0xf]
    %v597 = vld [vmem:[%s586 + $0x28] sm:$0xf]
    %v598 = vld [vmem:[%s586 + $0x2c] sm:$0xf]
    %v599 = vld [vmem:[%s586 + $0x30] sm:$0xf]
    %v600 = vld [vmem:[%s586 + $0x34] sm:$0xf]
    %v601 = vld [vmem:[%s586 + $0x38] sm:$0xf]
    %v602 = vld [vmem:[%s586 + $0x3c] sm:$0xf]
    %v603 = vld [vmem:[#allocation8 + $0x5] sm:$0x1]
    %v604 = vlaneseq
    %v605 = vshrl.u32 %v604, 7
    %v606 = vsub.s32 0, %v605
    %v607 = vrot.slane %v603, %v606
    %v624 = vunpack.c.l.b16 %v587
    %v625 = vunpack.c.l.b16 %v588
    %v626 = vunpack.c.l.b16 %v589
    %v627 = vunpack.c.l.b16 %v590
    %v628 = vunpack.c.l.b16 %v591
    %v629 = vunpack.c.l.b16 %v592
    %v630 = vunpack.c.l.b16 %v593
    %v631 = vunpack.c.l.b16 %v594
    %v632 = vunpack.c.l.b16 %v595
    %v633 = vunpack.c.l.b16 %v596
    %v634 = vunpack.c.l.b16 %v597
    %v635 = vunpack.c.l.b16 %v598
    %v636 = vunpack.c.l.b16 %v599
    %v637 = vunpack.c.l.b16 %v600
    %v638 = vunpack.c.l.b16 %v601
    %v639 = vunpack.c.l.b16 %v602
    %v640 = vpack.c.b16 %v625, %v624
    %v641 = vpack.c.b16 %v627, %v626
    %v642 = vpack.c.b16 %v629, %v628
    %v643 = vpack.c.b16 %v631, %v630
    %v644 = vpack.c.b16 %v633, %v632
    %v645 = vpack.c.b16 %v635, %v634
    %v646 = vpack.c.b16 %v637, %v636
    %v647 = vpack.c.b16 %v639, %v638
    %656 = vmatprep.subr.bf16.mxu0 0
    %657 = vmatpush1.bf16.msra.mxu0 %v647
    %658 = vmatprep.subr.bf16.mxu0 0
    %659 = vmatpush1.bf16.msra.mxu0 %v646
    %660 = vmatprep.subr.bf16.mxu0 0
    %661 = vmatpush1.bf16.msra.mxu0 %v645
    %662 = vmatprep.subr.bf16.mxu0 0
    %663 = vmatpush1.bf16.msra.mxu0 %v644
    %664 = vmatprep.subr.bf16.mxu0 0
    %665 = vmatpush1.bf16.msra.mxu0 %v643
    %666 = vmatprep.subr.bf16.mxu0 0
    %667 = vmatpush1.bf16.msra.mxu0 %v642
    %668 = vmatprep.subr.bf16.mxu0 0
    %669 = vmatpush1.bf16.msra.mxu0 %v641
    %670 = vmatprep.subr.bf16.mxu0 0
    %671 = vmatpush1.bf16.msra.mxu0 %v640
    %672 = vmatprep.subr.bf16.mxu0 0
    %673 = vmatpush2.bf16.msra.mxu0 0
    %674 = vmatprep.subr.bf16.mxu0 0
    %675 = vmatpush2.bf16.msra.mxu0 0
    %676 = vmatprep.subr.bf16.mxu0 0
    %677 = vmatpush2.bf16.msra.mxu0 0
    %678 = vmatprep.subr.bf16.mxu0 0
    %679 = vmatpush2.bf16.msra.mxu0 0
    %680 = vmatprep.subr.bf16.mxu0 0
    %681 = vmatpush2.bf16.msra.mxu0 0
    %682 = vmatprep.subr.bf16.mxu0 0
    %683 = vmatpush2.bf16.msra.mxu0 0
    %684 = vmatprep.subr.bf16.mxu0 0
    %685 = vmatpush2.bf16.msra.mxu0 0
    %686 = vmatprep.subr.bf16.mxu0 0
    %687 = vmatpush2.bf16.msra.mxu0 0
    %688 = vmatprep.mubr.bf16.mxu0 0
    %689 = vmatmul.mubr.bf16.gmra.mxu0 %v585
    %v690 = vpop.f32.mrf.mxu0
    %v691 = vadd.f32 %v607, %v690
    %v692 = vpop.f32.mrf.mxu0
    %v693 = vpop.f32.mrf.mxu0
    %v694 = vpop.f32.mrf.mxu0
    %695 = vdwg.mxu0
    %696 = vst [vmem:[#allocation10] sm:$0xff] %v691
    // Predicated region
    $region34: #{tpu_custom_call.1} parent=1 // pred_check
      _
    $region35: #{tpu_custom_call.1} parent=1 // pred_check_branch
      %698 = sbr.rel (0) target = $region37
    $region36: #{tpu_custom_call.1} parent=1 // pred_region
      %s700 = ssub.s32 128, 128
      %701 = vsyncadd [#allocation4], %s700
      %s703 = sshll.u32 [#allocation10], 4
      %s704 = int_to_ptr.vmem [resolvable:$true] %s703
      %706 = dma.vmem_to_hbm [thread:$0]  %s704, 128, %s4, [#allocation4]
    $region37: #{tpu_custom_call.1} parent=1 // pred_fallthru
      _
    // Predicated region
    $region38: #{tpu_custom_call.1} parent=1 // pred_check
      _
    $region39: #{tpu_custom_call.1} parent=1 // pred_check_branch
      %708 = sbr.rel (0) target = $region41
    $region40: #{tpu_custom_call.1} parent=1 // pred_region
      %709 = dma.done [#allocation4], 128
    $region41: #{tpu_custom_call.1} parent=1 // pred_fallthru
      _
    %710 = vsyncpa [#allocation3], 1
    %711 = vsyncpa [#allocation6], 1
    %712 = vsyncpa [#allocation9], 1
    %713 = vsyncpa [#allocation4], 1

// kernel: tpu_custom_call.1
$region0: #{tpu_custom_call.1}
  #allocation0 [shape = 'u32[]', space=smem, size = 0x4, offset = 0x4, fixed_abs, tag = 'smem constant byte address 0x4 - core index']
  #allocation1 [shape = 'u32[144,128]{1,0:T(1,128)}', space=vmem, size = 0x12000, scoped, tag = 'internal scratch']
  %s0 = inlined_call_operand.hbm [shape: f32[8,32], index: 0, kind: input, shape index: {}]
  %s1 = inlined_call_operand.hbm [shape: bf16[32,128], index: 1, kind: input, shape index: {}]
  %s2 = inlined_call_operand.hbm [shape: bf16[5,128,128], index: 2, kind: input, shape index: {}]
  %s3 = inlined_call_operand.hbm [shape: f32[8,128], index: 3, kind: input, shape index: {}]
  %s4 = inlined_call_operand.hbm [shape: f32[8,128], index: 4, kind: output, shape index: {}]
  %s5 = sld [smem:[#allocation0]]
  $region42: #{tpu_custom_call.1} parent=0
    _
  %s7 = ssub.s32 1, %s5
  %s8 = scalar_select 0, %s7, %s5
  $region1: #{tpu_custom_call.1} parent=0
    #allocation2 [shape = 'u8[4096]{0}', space=vmem, size = 0x1000, scoped, tag = 'input window, operand 0, single buffered']
    #allocation3 [shape = 's32[1]{0}', space=sflag, size = 0x4, scoped, tag = 'scoped memory for tpu_custom_call.1']
    #allocation4 [shape = 's32[1]{0}', space=sflag, size = 0x4, scoped, tag = 'scoped memory for tpu_custom_call.1']
    #allocation5 [shape = 'u8[8192]{0}', space=vmem, size = 0x2000, scoped, tag = 'input window, operand 1, single buffered']
    #allocation6 [shape = 's32[1]{0}', space=sflag, size = 0x4, scoped, tag = 'scoped memory for tpu_custom_call.1']
    #allocation7 [shape = 'u8[163840]{0}', space=vmem, size = 0x28000, scoped, tag = 'input window, operand 2, single buffered']
    #allocation8 [shape = 'u8[4096]{0}', space=vmem, size = 0x1000, scoped, tag = 'input window, operand 3, single buffered']
    #allocation9 [shape = 's32[1]{0}', space=sflag, size = 0x4, scoped, tag = 'scoped memory for tpu_custom_call.1']
    #allocation10 [shape = 'u8[4096]{0}', space=vmem, size = 0x1000, scoped, tag = 'output window, operand 0, single buffered']
    %9 = vsyncpa [#allocation3], 0
    %10 = vsyncpa [#allocation6], 0
    %11 = vsyncpa [#allocation9], 0
    %12 = vsyncpa [#allocation4], 0
    // Predicated region
    $region2: #{tpu_custom_call.1} parent=1 // pred_check
      _
    $region3: #{tpu_custom_call.1} parent=1 // pred_check_branch
      %14 = sbr.rel (0) target = $region5
    $region4: #{tpu_custom_call.1} parent=1 // pred_region
      %s16 = ssub.s32 128, 128
      %17 = vsyncadd [#allocation3], %s16
      %s19 = sshll.u32 [#allocation2], 4
      %s20 = int_to_ptr.vmem [resolvable:$true] %s19
      %22 = dma.hbm_to_vmem [thread:$0]  %s0, 128, %s20, [#allocation3]
    $region5: #{tpu_custom_call.1} parent=1 // pred_fallthru
      _
    // Predicated region
    $region6: #{tpu_custom_call.1} parent=1 // pred_check
      _
    $region7: #{tpu_custom_call.1} parent=1 // pred_check_branch
      %24 = sbr.rel (0) target = $region9
    $region8: #{tpu_custom_call.1} parent=1 // pred_region
      %s26 = ssub.s32 256, 256
      %27 = vsyncadd [#allocation6], %s26
      %s28 = sshll.u32 [#allocation5], 4
      %s29 = int_to_ptr.vmem [resolvable:$true] %s28
      %34 = dma.hbm_to_vmem [thread:$0]  %s1, 256, %s29, [#allocation6], 64, 64, 4
    $region9: #{tpu_custom_call.1} parent=1 // pred_fallthru
      _
    // Predicated region
    $region10: #{tpu_custom_call.1} parent=1 // pred_check
      _
    $region11: #{tpu_custom_call.1} parent=1 // pred_check_branch
      %36 = sbr.rel (0) target = $region13
    $region12: #{tpu_custom_call.1} parent=1 // pred_region
      %s38 = ssub.s32 5120, 5120
      %39 = vsyncadd [#allocation6], %s38
      %s40 = sshll.u32 [#allocation7], 4
      %s41 = int_to_ptr.vmem [resolvable:$true] %s40
      %46 = dma.hbm_to_vmem [thread:$0]  %s2, 5120, %s41, [#allocation6], 64, 64, 4
    $region13: #{tpu_custom_call.1} parent=1 // pred_fallthru
      _
    // Predicated region
    $region14: #{tpu_custom_call.1} parent=1 // pred_check
      _
    $region15: #{tpu_custom_call.1} parent=1 // pred_check_branch
      %48 = sbr.rel (0) target = $region17
    $region16: #{tpu_custom_call.1} parent=1 // pred_region
      %s50 = ssub.s32 128, 128
      %51 = vsyncadd [#allocation9], %s50
      %s53 = sshll.u32 [#allocation8], 4
      %s54 = int_to_ptr.vmem [resolvable:$true] %s53
      %56 = dma.hbm_to_vmem [thread:$0]  %s3, 128, %s54, [#allocation9]
    $region17: #{tpu_custom_call.1} parent=1 // pred_fallthru
      _
    // Predicated region
    $region18: #{tpu_custom_call.1} parent=1 // pred_check
      _
    $region19: #{tpu_custom_call.1} parent=1 // pred_check_branch
      %58 = sbr.rel (0) target = $region21
    $region20: #{tpu_custom_call.1} parent=1 // pred_region
      %59 = dma.done [#allocation3], 128
    $region21: #{tpu_custom_call.1} parent=1 // pred_fallthru
      _
    // Predicated region
    $region22: #{tpu_custom_call.1} parent=1 // pred_check
      _
    $region23: #{tpu_custom_call.1} parent=1 // pred_check_branch
      %61 = sbr.rel (0) target = $region25
    $region24: #{tpu_custom_call.1} parent=1 // pred_region
      %62 = dma.done [#allocation6], 256
    $region25: #{tpu_custom_call.1} parent=1 // pred_fallthru
      _
    // Predicated region
    $region26: #{tpu_custom_call.1} parent=1 // pred_check
      _
    $region27: #{tpu_custom_call.1} parent=1 // pred_check_branch
      %64 = sbr.rel (0) target = $region29
    $region28: #{tpu_custom_call.1} parent=1 // pred_region
      %65 = dma.done [#allocation6], 5120
    $region29: #{tpu_custom_call.1} parent=1 // pred_fallthru
      _
    // Predicated region
    $region30: #{tpu_custom_call.1} parent=1 // pred_check
      _
    $region31: #{tpu_custom_call.1} parent=1 // pred_check_branch
      %67 = sbr.rel (0) target = $region33
    $region32: #{tpu_custom_call.1} parent=1 // pred_region
      %68 = dma.done [#allocation9], 128
    $region33: #{tpu_custom_call.1} parent=1 // pred_fallthru
      _
    %v70 = vld [vmem:[#allocation2] sm:$0xff]
    %v71 = vpack.c.bf16 %v70, %v70
    %v72 = vld [vmem:[#allocation5] sm:$0xf]
    %v73 = vld [vmem:[#allocation5 + $0x4] sm:$0xf]
    %v74 = vld [vmem:[#allocation5 + $0x8] sm:$0xf]
    %v75 = vld [vmem:[#allocation5 + $0xc] sm:$0xf]
    %v76 = vld [vmem:[#allocation8] sm:$0x1]
    %v77 = vlaneseq
    %v78 = vshrl.u32 %v77, 7
    %v79 = vsub.s32 0, %v78
    %v80 = vrot.slane %v76, %v79
    %v85 = vunpack.c.l.b16 %v72
    %v86 = vunpack.c.l.b16 %v73
    %v87 = vunpack.c.l.b16 %v74
    %v88 = vunpack.c.l.b16 %v75
    %v89 = vpack.c.b16 %v86, %v85
    %v90 = vpack.c.b16 %v88, %v87
    %vm93 = vcmask 261120
    %v95 = vsel %vm93, %v71, 0
    %97 = vmatprep.subr.bf16.mxu0 0
    %98 = vmatpush1.bf16.msra.mxu0 0
    %99 = vmatprep.subr.bf16.mxu0 0
    %100 = vmatpush1.bf16.msra.mxu0 0
    %101 = vmatprep.subr.bf16.mxu0 0
    %102 = vmatpush1.bf16.msra.mxu0 0
    %103 = vmatprep.subr.bf16.mxu0 0
    %104 = vmatpush1.bf16.msra.mxu0 0
    %105 = vmatprep.subr.bf16.mxu0 0
    %106 = vmatpush1.bf16.msra.mxu0 0
    %107 = vmatprep.subr.bf16.mxu0 0
    %108 = vmatpush1.bf16.msra.mxu0 0
    %109 = vmatprep.subr.bf16.mxu0 0
    %110 = vmatpush1.bf16.msra.mxu0 %v90
    %111 = vmatprep.subr.bf16.mxu0 0
    %112 = vmatpush1.bf16.msra.mxu0 %v89
    %113 = vmatprep.subr.bf16.mxu0 0
    %114 = vmatpush2.bf16.msra.mxu0 0
    %115 = vmatprep.subr.bf16.mxu0 0
    %116 = vmatpush2.bf16.msra.mxu0 0
    %117 = vmatprep.subr.bf16.mxu0 0
    %118 = vmatpush2.bf16.msra.mxu0 0
    %119 = vmatprep.subr.bf16.mxu0 0
    %120 = vmatpush2.bf16.msra.mxu0 0
    %121 = vmatprep.subr.bf16.mxu0 0
    %122 = vmatpush2.bf16.msra.mxu0 0
    %123 = vmatprep.subr.bf16.mxu0 0
    %124 = vmatpush2.bf16.msra.mxu0 0
    %125 = vmatprep.subr.bf16.mxu0 0
    %126 = vmatpush2.bf16.msra.mxu0 0
    %127 = vmatprep.subr.bf16.mxu0 0
    %128 = vmatpush2.bf16.msra.mxu0 0
    %129 = vmatprep.mubr.bf16.mxu0 0
    %130 = vmatmul.mubr.bf16.gmra.mxu0 %v95
    %v131 = vpop.f32.mrf.mxu0
    %v132 = vadd.f32 %v80, %v131
    %v133 = vpop.f32.mrf.mxu0
    %v134 = vpop.f32.mrf.mxu0
    %v135 = vpop.f32.mrf.mxu0
    %136 = vdwg.mxu0
    %v137 = vmax.f32 %v132, 0.0
    %v138 = vpack.c.bf16 %v137, %v137
    %v139 = vld [vmem:[#allocation7] sm:$0xf]
    %v140 = vld [vmem:[#allocation7 + $0x4] sm:$0xf]
    %v141 = vld [vmem:[#allocation7 + $0x8] sm:$0xf]
    %v142 = vld [vmem:[#allocation7 + $0xc] sm:$0xf]
    %v143 = vld [vmem:[#allocation7 + $0x10] sm:$0xf]
    %v144 = vld [vmem:[#allocation7 + $0x14] sm:$0xf]
    %v145 = vld [vmem:[#allocation7 + $0x18] sm:$0xf]
    %v146 = vld [vmem:[#allocation7 + $0x1c] sm:$0xf]
    %v147 = vld [vmem:[#allocation7 + $0x20] sm:$0xf]
    %v148 = vld [vmem:[#allocation7 + $0x24] sm:$0xf]
    %v149 = vld [vmem:[#allocation7 + $0x28] sm:$0xf]
    %v150 = vld [vmem:[#allocation7 + $0x2c] sm:$0xf]
    %v151 = vld [vmem:[#allocation7 + $0x30] sm:$0xf]
    %v152 = vld [vmem:[#allocation7 + $0x34] sm:$0xf]
    %v153 = vld [vmem:[#allocation7 + $0x38] sm:$0xf]
    %v154 = vld [vmem:[#allocation7 + $0x3c] sm:$0xf]
    %v155 = vld [vmem:[#allocation8 + $0x1] sm:$0x1]
    %v156 = vlaneseq
    %v157 = vshrl.u32 %v156, 7
    %v158 = vsub.s32 0, %v157
    %v159 = vrot.slane %v155, %v158
    %v176 = vunpack.c.l.b16 %v139
    %v177 = vunpack.c.l.b16 %v140
    %v178 = vunpack.c.l.b16 %v141
    %v179 = vunpack.c.l.b16 %v142
    %v180 = vunpack.c.l.b16 %v143
    %v181 = vunpack.c.l.b16 %v144
    %v182 = vunpack.c.l.b16 %v145
    %v183 = vunpack.c.l.b16 %v146
    %v184 = vunpack.c.l.b16 %v147
    %v185 = vunpack.c.l.b16 %v148
    %v186 = vunpack.c.l.b16 %v149
    %v187 = vunpack.c.l.b16 %v150
    %v188 = vunpack.c.l.b16 %v151
    %v189 = vunpack.c.l.b16 %v152
    %v190 = vunpack.c.l.b16 %v153
    %v191 = vunpack.c.l.b16 %v154
    %v192 = vpack.c.b16 %v177, %v176
    %v193 = vpack.c.b16 %v179, %v178
    %v194 = vpack.c.b16 %v181, %v180
    %v195 = vpack.c.b16 %v183, %v182
    %v196 = vpack.c.b16 %v185, %v184
    %v197 = vpack.c.b16 %v187, %v186
    %v198 = vpack.c.b16 %v189, %v188
    %v199 = vpack.c.b16 %v191, %v190
    %208 = vmatprep.subr.bf16.mxu0 0
    %209 = vmatpush1.bf16.msra.mxu0 %v199
    %210 = vmatprep.subr.bf16.mxu0 0
    %211 = vmatpush1.bf16.msra.mxu0 %v198
    %212 = vmatprep.subr.bf16.mxu0 0
    %213 = vmatpush1.bf16.msra.mxu0 %v197
    %214 = vmatprep.subr.bf16.mxu0 0
    %215 = vmatpush1.bf16.msra.mxu0 %v196
    %216 = vmatprep.subr.bf16.mxu0 0
    %217 = vmatpush1.bf16.msra.mxu0 %v195
    %218 = vmatprep.subr.bf16.mxu0 0
    %219 = vmatpush1.bf16.msra.mxu0 %v194
    %220 = vmatprep.subr.bf16.mxu0 0
    %221 = vmatpush1.bf16.msra.mxu0 %v193
    %222 = vmatprep.subr.bf16.mxu0 0
    %223 = vmatpush1.bf16.msra.mxu0 %v192
    %224 = vmatprep.subr.bf16.mxu0 0
    %225 = vmatpush2.bf16.msra.mxu0 0
    %226 = vmatprep.subr.bf16.mxu0 0
    %227 = vmatpush2.bf16.msra.mxu0 0
    %228 = vmatprep.subr.bf16.mxu0 0
    %229 = vmatpush2.bf16.msra.mxu0 0
    %230 = vmatprep.subr.bf16.mxu0 0
    %231 = vmatpush2.bf16.msra.mxu0 0
    %232 = vmatprep.subr.bf16.mxu0 0
    %233 = vmatpush2.bf16.msra.mxu0 0
    %234 = vmatprep.subr.bf16.mxu0 0
    %235 = vmatpush2.bf16.msra.mxu0 0
    %236 = vmatprep.subr.bf16.mxu0 0
    %237 = vmatpush2.bf16.msra.mxu0 0
    %238 = vmatprep.subr.bf16.mxu0 0
    %239 = vmatpush2.bf16.msra.mxu0 0
    %240 = vmatprep.mubr.bf16.mxu0 0
    %241 = vmatmul.mubr.bf16.gmra.mxu0 %v138
    %v242 = vpop.f32.mrf.mxu0
    %v243 = vadd.f32 %v159, %v242
    %v244 = vpop.f32.mrf.mxu0
    %v245 = vpop.f32.mrf.mxu0
    %v246 = vpop.f32.mrf.mxu0
    %247 = vdwg.mxu0
    %v248 = vmax.f32 %v243, 0.0
    %v249 = vpack.c.bf16 %v248, %v248
    %s250 = scalar_lea.vmem [#allocation7], 64
    %v251 = vld [vmem:[%s250] sm:$0xf]
    %v252 = vld [vmem:[%s250 + $0x4] sm:$0xf]
    %v253 = vld [vmem:[%s250 + $0x8] sm:$0xf]
    %v254 = vld [vmem:[%s250 + $0xc] sm:$0xf]
    %v255 = vld [vmem:[%s250 + $0x10] sm:$0xf]
    %v256 = vld [vmem:[%s250 + $0x14] sm:$0xf]
    %v257 = vld [vmem:[%s250 + $0x18] sm:$0xf]
    %v258 = vld [vmem:[%s250 + $0x1c] sm:$0xf]
    %v259 = vld [vmem:[%s250 + $0x20] sm:$0xf]
    %v260 = vld [vmem:[%s250 + $0x24] sm:$0xf]
    %v261 = vld [vmem:[%s250 + $0x28] sm:$0xf]
    %v262 = vld [vmem:[%s250 + $0x2c] sm:$0xf]
    %v263 = vld [vmem:[%s250 + $0x30] sm:$0xf]
    %v264 = vld [vmem:[%s250 + $0x34] sm:$0xf]
    %v265 = vld [vmem:[%s250 + $0x38] sm:$0xf]
    %v266 = vld [vmem:[%s250 + $0x3c] sm:$0xf]
    %v267 = vld [vmem:[#allocation8 + $0x2] sm:$0x1]
    %v268 = vlaneseq
    %v269 = vshrl.u32 %v268, 7
    %v270 = vsub.s32 0, %v269
    %v271 = vrot.slane %v267, %v270
    %v288 = vunpack.c.l.b16 %v251
    %v289 = vunpack.c.l.b16 %v252
    %v290 = vunpack.c.l.b16 %v253
    %v291 = vunpack.c.l.b16 %v254
    %v292 = vunpack.c.l.b16 %v255
    %v293 = vunpack.c.l.b16 %v256
    %v294 = vunpack.c.l.b16 %v257
    %v295 = vunpack.c.l.b16 %v258
    %v296 = vunpack.c.l.b16 %v259
    %v297 = vunpack.c.l.b16 %v260
    %v298 = vunpack.c.l.b16 %v261
    %v299 = vunpack.c.l.b16 %v262
    %v300 = vunpack.c.l.b16 %v263
    %v301 = vunpack.c.l.b16 %v264
    %v302 = vunpack.c.l.b16 %v265
    %v303 = vunpack.c.l.b16 %v266
    %v304 = vpack.c.b16 %v289, %v288
    %v305 = vpack.c.b16 %v291, %v290
    %v306 = vpack.c.b16 %v293, %v292
    %v307 = vpack.c.b16 %v295, %v294
    %v308 = vpack.c.b16 %v297, %v296
    %v309 = vpack.c.b16 %v299, %v298
    %v310 = vpack.c.b16 %v301, %v300
    %v311 = vpack.c.b16 %v303, %v302
    %320 = vmatprep.subr.bf16.mxu0 0
    %321 = vmatpush1.bf16.msra.mxu0 %v311
    %322 = vmatprep.subr.bf16.mxu0 0
    %323 = vmatpush1.bf16.msra.mxu0 %v310
    %324 = vmatprep.subr.bf16.mxu0 0
    %325 = vmatpush1.bf16.msra.mxu0 %v309
    %326 = vmatprep.subr.bf16.mxu0 0
    %327 = vmatpush1.bf16.msra.mxu0 %v308
    %328 = vmatprep.subr.bf16.mxu0 0
    %329 = vmatpush1.bf16.msra.mxu0 %v307
    %330 = vmatprep.subr.bf16.mxu0 0
    %331 = vmatpush1.bf16.msra.mxu0 %v306
    %332 = vmatprep.subr.bf16.mxu0 0
    %333 = vmatpush1.bf16.msra.mxu0 %v305
    %334 = vmatprep.subr.bf16.mxu0 0
    %335 = vmatpush1.bf16.msra.mxu0 %v304
    %336 = vmatprep.subr.bf16.mxu0 0
    %337 = vmatpush2.bf16.msra.mxu0 0
    %338 = vmatprep.subr.bf16.mxu0 0
    %339 = vmatpush2.bf16.msra.mxu0 0
    %340 = vmatprep.subr.bf16.mxu0 0
    %341 = vmatpush2.bf16.msra.mxu0 0
    %342 = vmatprep.subr.bf16.mxu0 0
    %343 = vmatpush2.bf16.msra.mxu0 0
    %344 = vmatprep.subr.bf16.mxu0 0
    %345 = vmatpush2.bf16.msra.mxu0 0
    %346 = vmatprep.subr.bf16.mxu0 0
    %347 = vmatpush2.bf16.msra.mxu0 0
    %348 = vmatprep.subr.bf16.mxu0 0
    %349 = vmatpush2.bf16.msra.mxu0 0
    %350 = vmatprep.subr.bf16.mxu0 0
    %351 = vmatpush2.bf16.msra.mxu0 0
    %352 = vmatprep.mubr.bf16.mxu0 0
    %353 = vmatmul.mubr.bf16.gmra.mxu0 %v249
    %v354 = vpop.f32.mrf.mxu0
    %v355 = vadd.f32 %v271, %v354
    %v356 = vpop.f32.mrf.mxu0
    %v357 = vpop.f32.mrf.mxu0
    %v358 = vpop.f32.mrf.mxu0
    %359 = vdwg.mxu0
    %v360 = vmax.f32 %v355, 0.0
    %v361 = vpack.c.bf16 %v360, %v360
    %s362 = scalar_lea.vmem [#allocation7], 128
    %v363 = vld [vmem:[%s362] sm:$0xf]
    %v364 = vld [vmem:[%s362 + $0x4] sm:$0xf]
    %v365 = vld [vmem:[%s362 + $0x8] sm:$0xf]
    %v366 = vld [vmem:[%s362 + $0xc] sm:$0xf]
    %v367 = vld [vmem:[%s362 + $0x10] sm:$0xf]
    %v368 = vld [vmem:[%s362 + $0x14] sm:$0xf]
    %v369 = vld [vmem:[%s362 + $0x18] sm:$0xf]
    %v370 = vld [vmem:[%s362 + $0x1c] sm:$0xf]
    %v371 = vld [vmem:[%s362 + $0x20] sm:$0xf]
    %v372 = vld [vmem:[%s362 + $0x24] sm:$0xf]
    %v373 = vld [vmem:[%s362 + $0x28] sm:$0xf]
    %v374 = vld [vmem:[%s362 + $0x2c] sm:$0xf]
    %v375 = vld [vmem:[%s362 + $0x30] sm:$0xf]
    %v376 = vld [vmem:[%s362 + $0x34] sm:$0xf]
    %v377 = vld [vmem:[%s362 + $0x38] sm:$0xf]
    %v378 = vld [vmem:[%s362 + $0x3c] sm:$0xf]
    %v379 = vld [vmem:[#allocation8 + $0x3] sm:$0x1]
    %v380 = vlaneseq
    %v381 = vshrl.u32 %v380, 7
    %v382 = vsub.s32 0, %v381
    %v383 = vrot.slane %v379, %v382
    %v400 = vunpack.c.l.b16 %v363
    %v401 = vunpack.c.l.b16 %v364
    %v402 = vunpack.c.l.b16 %v365
    %v403 = vunpack.c.l.b16 %v366
    %v404 = vunpack.c.l.b16 %v367
    %v405 = vunpack.c.l.b16 %v368
    %v406 = vunpack.c.l.b16 %v369
    %v407 = vunpack.c.l.b16 %v370
    %v408 = vunpack.c.l.b16 %v371
    %v409 = vunpack.c.l.b16 %v372
    %v410 = vunpack.c.l.b16 %v373
    %v411 = vunpack.c.l.b16 %v374
    %v412 = vunpack.c.l.b16 %v375
    %v413 = vunpack.c.l.b16 %v376
    %v414 = vunpack.c.l.b16 %v377
    %v415 = vunpack.c.l.b16 %v378
    %v416 = vpack.c.b16 %v401, %v400
    %v417 = vpack.c.b16 %v403, %v402
    %v418 = vpack.c.b16 %v405, %v404
    %v419 = vpack.c.b16 %v407, %v406
    %v420 = vpack.c.b16 %v409, %v408
    %v421 = vpack.c.b16 %v411, %v410
    %v422 = vpack.c.b16 %v413, %v412
    %v423 = vpack.c.b16 %v415, %v414
    %432 = vmatprep.subr.bf16.mxu0 0
    %433 = vmatpush1.bf16.msra.mxu0 %v423
    %434 = vmatprep.subr.bf16.mxu0 0
    %435 = vmatpush1.bf16.msra.mxu0 %v422
    %436 = vmatprep.subr.bf16.mxu0 0
    %437 = vmatpush1.bf16.msra.mxu0 %v421
    %438 = vmatprep.subr.bf16.mxu0 0
    %439 = vmatpush1.bf16.msra.mxu0 %v420
    %440 = vmatprep.subr.bf16.mxu0 0
    %441 = vmatpush1.bf16.msra.mxu0 %v419
    %442 = vmatprep.subr.bf16.mxu0 0
    %443 = vmatpush1.bf16.msra.mxu0 %v418
    %444 = vmatprep.subr.bf16.mxu0 0
    %445 = vmatpush1.bf16.msra.mxu0 %v417
    %446 = vmatprep.subr.bf16.mxu0 0
    %447 = vmatpush1.bf16.msra.mxu0 %v416
    %448 = vmatprep.subr.bf16.mxu0 0
    %449 = vmatpush2.bf16.msra.mxu0 0
    %450 = vmatprep.subr.bf16.mxu0 0
    %451 = vmatpush2.bf16.msra.mxu0 0
    %452 = vmatprep.subr.bf16.mxu0 0
    %453 = vmatpush2.bf16.msra.mxu0 0
    %454 = vmatprep.subr.bf16.mxu0 0
    %455 = vmatpush2.bf16.msra.mxu0 0
    %456 = vmatprep.subr.bf16.mxu0 0
    %457 = vmatpush2.bf16.msra.mxu0 0
    %458 = vmatprep.subr.bf16.mxu0 0
    %459 = vmatpush2.bf16.msra.mxu0 0
    %460 = vmatprep.subr.bf16.mxu0 0
    %461 = vmatpush2.bf16.msra.mxu0 0
    %462 = vmatprep.subr.bf16.mxu0 0
    %463 = vmatpush2.bf16.msra.mxu0 0
    %464 = vmatprep.mubr.bf16.mxu0 0
    %465 = vmatmul.mubr.bf16.gmra.mxu0 %v361
    %v466 = vpop.f32.mrf.mxu0
    %v467 = vadd.f32 %v383, %v466
    %v468 = vpop.f32.mrf.mxu0
    %v469 = vpop.f32.mrf.mxu0
    %v470 = vpop.f32.mrf.mxu0
    %471 = vdwg.mxu0
    %v472 = vmax.f32 %v467, 0.0
    %v473 = vpack.c.bf16 %v472, %v472
    %s474 = scalar_lea.vmem [#allocation7], 192
    %v475 = vld [vmem:[%s474] sm:$0xf]
    %v476 = vld [vmem:[%s474 + $0x4] sm:$0xf]
    %v477 = vld [vmem:[%s474 + $0x8] sm:$0xf]
    %v478 = vld [vmem:[%s474 + $0xc] sm:$0xf]
    %v479 = vld [vmem:[%s474 + $0x10] sm:$0xf]
    %v480 = vld [vmem:[%s474 + $0x14] sm:$0xf]
    %v481 = vld [vmem:[%s474 + $0x18] sm:$0xf]
    %v482 = vld [vmem:[%s474 + $0x1c] sm:$0xf]
    %v483 = vld [vmem:[%s474 + $0x20] sm:$0xf]
    %v484 = vld [vmem:[%s474 + $0x24] sm:$0xf]
    %v485 = vld [vmem:[%s474 + $0x28] sm:$0xf]
    %v486 = vld [vmem:[%s474 + $0x2c] sm:$0xf]
    %v487 = vld [vmem:[%s474 + $0x30] sm:$0xf]
    %v488 = vld [vmem:[%s474 + $0x34] sm:$0xf]
    %v489 = vld [vmem:[%s474 + $0x38] sm:$0xf]
    %v490 = vld [vmem:[%s474 + $0x3c] sm:$0xf]
    %v491 = vld [vmem:[#allocation8 + $0x4] sm:$0x1]
    %v492 = vlaneseq
    %v493 = vshrl.u32 %v492, 7
    %v494 = vsub.s32 0, %v493
    %v495 = vrot.slane %v491, %v494
    %v512 = vunpack.c.l.b16 %v475
    %v513 = vunpack.c.l.b16 %v476
    %v514 = vunpack.c.l.b16 %v477
    %v515 = vunpack.c.l.b16 %v478
    %v516 = vunpack.c.l.b16 %v479
    %v517 = vunpack.c.l.b16 %v480
    %v518 = vunpack.c.l.b16 %v481
    %v519 = vunpack.c.l.b16 %v482
    %v520 = vunpack.c.l.b16 %v483
    %v521 = vunpack.c.l.b16 %v484
    %v522 = vunpack.c.l.b16 %v485
    %v523 = vunpack.c.l.b16 %v486
    %v524 = vunpack.c.l.b16 %v487
    %v525 = vunpack.c.l.b16 %v488
    %v526 = vunpack.c.l.b16 %v489
    %v527 = vunpack.c.l.b16 %v490
    %v528 = vpack.c.b16 %v513, %v512
    %v529 = vpack.c.b16 %v515, %v514
    %v530 = vpack.c.b16 %v517, %v516
    %v531 = vpack.c.b16 %v519, %v518
    %v532 = vpack.c.b16 %v521, %v520
    %v533 = vpack.c.b16 %v523, %v522
    %v534 = vpack.c.b16 %v525, %v524
    %v535 = vpack.c.b16 %v527, %v526
    %544 = vmatprep.subr.bf16.mxu0 0
    %545 = vmatpush1.bf16.msra.mxu0 %v535
    %546 = vmatprep.subr.bf16.mxu0 0
    %547 = vmatpush1.bf16.msra.mxu0 %v534
    %548 = vmatprep.subr.bf16.mxu0 0
    %549 = vmatpush1.bf16.msra.mxu0 %v533
    %550 = vmatprep.subr.bf16.mxu0 0
    %551 = vmatpush1.bf16.msra.mxu0 %v532
    %552 = vmatprep.subr.bf16.mxu0 0
    %553 = vmatpush1.bf16.msra.mxu0 %v531
    %554 = vmatprep.subr.bf16.mxu0 0
    %555 = vmatpush1.bf16.msra.mxu0 %v530
    %556 = vmatprep.subr.bf16.mxu0 0
    %557 = vmatpush1.bf16.msra.mxu0 %v529
    %558 = vmatprep.subr.bf16.mxu0 0
    %559 = vmatpush1.bf16.msra.mxu0 %v528
    %560 = vmatprep.subr.bf16.mxu0 0
    %561 = vmatpush2.bf16.msra.mxu0 0
    %562 = vmatprep.subr.bf16.mxu0 0
    %563 = vmatpush2.bf16.msra.mxu0 0
    %564 = vmatprep.subr.bf16.mxu0 0
    %565 = vmatpush2.bf16.msra.mxu0 0
    %566 = vmatprep.subr.bf16.mxu0 0
    %567 = vmatpush2.bf16.msra.mxu0 0
    %568 = vmatprep.subr.bf16.mxu0 0
    %569 = vmatpush2.bf16.msra.mxu0 0
    %570 = vmatprep.subr.bf16.mxu0 0
    %571 = vmatpush2.bf16.msra.mxu0 0
    %572 = vmatprep.subr.bf16.mxu0 0
    %573 = vmatpush2.bf16.msra.mxu0 0
    %574 = vmatprep.subr.bf16.mxu0 0
    %575 = vmatpush2.bf16.msra.mxu0 0
    %576 = vmatprep.mubr.bf16.mxu0 0
    %577 = vmatmul.mubr.bf16.gmra.mxu0 %v473
    %v578 = vpop.f32.mrf.mxu0
    %v579 = vadd.f32 %v495, %v578
    %v580 = vpop.f32.mrf.mxu0
    %v581 = vpop.f32.mrf.mxu0
    %v582 = vpop.f32.mrf.mxu0
    %583 = vdwg.mxu0
    %v584 = vmax.f32 %v579, 0.0
    %v585 = vpack.c.bf16 %v584, %v584
    %s586 = scalar_lea.vmem [#allocation7], 256
    %v587 = vld [vmem:[%s586] sm:$0xf]
    %v588 = vld [vmem:[%s586 + $0x4] sm:$0xf]
    %v589 = vld [vmem:[%s586 + $0x8] sm:$0xf]
    %v590 = vld [vmem:[%s586 + $0xc] sm:$0xf]
    %v591 = vld [vmem:[%s586 + $0x10] sm:$0xf]
    %v592 = vld [vmem:[%s586 + $0x14] sm:$0xf]
    %v593 = vld [vmem:[%s586 + $0x18] sm:$0xf]
    %v594 = vld [vmem:[%s586 + $0x1c] sm:$0xf]
    %v595 = vld [vmem:[%s586 + $0x20] sm:$0xf]
    %v596 = vld [vmem:[%s586 + $0x24] sm:$0xf]
    %v597 = vld [vmem:[%s586 + $0x28] sm:$0xf]
    %v598 = vld [vmem:[%s586 + $0x2c] sm:$0xf]
    %v599 = vld [vmem:[%s586 + $0x30] sm:$0xf]
    %v600 = vld [vmem:[%s586 + $0x34] sm:$0xf]
    %v601 = vld [vmem:[%s586 + $0x38] sm:$0xf]
    %v602 = vld [vmem:[%s586 + $0x3c] sm:$0xf]
    %v603 = vld [vmem:[#allocation8 + $0x5] sm:$0x1]
    %v604 = vlaneseq
    %v605 = vshrl.u32 %v604, 7
    %v606 = vsub.s32 0, %v605
    %v607 = vrot.slane %v603, %v606
    %v624 = vunpack.c.l.b16 %v587
    %v625 = vunpack.c.l.b16 %v588
    %v626 = vunpack.c.l.b16 %v589
    %v627 = vunpack.c.l.b16 %v590
    %v628 = vunpack.c.l.b16 %v591
    %v629 = vunpack.c.l.b16 %v592
    %v630 = vunpack.c.l.b16 %v593
    %v631 = vunpack.c.l.b16 %v594
    %v632 = vunpack.c.l.b16 %v595
    %v633 = vunpack.c.l.b16 %v596
    %v634 = vunpack.c.l.b16 %v597
    %v635 = vunpack.c.l.b16 %v598
    %v636 = vunpack.c.l.b16 %v599
    %v637 = vunpack.c.l.b16 %v600
    %v638 = vunpack.c.l.b16 %v601
    %v639 = vunpack.c.l.b16 %v602
    %v640 = vpack.c.b16 %v625, %v624
    %v641 = vpack.c.b16 %v627, %v626
    %v642 = vpack.c.b16 %v629, %v628
    %v643 = vpack.c.b16 %v631, %v630
    %v644 = vpack.c.b16 %v633, %v632
    %v645 = vpack.c.b16 %v635, %v634
    %v646 = vpack.c.b16 %v637, %v636
    %v647 = vpack.c.b16 %v639, %v638
    %656 = vmatprep.subr.bf16.mxu0 0
    %657 = vmatpush1.bf16.msra.mxu0 %v647
    %658 = vmatprep.subr.bf16.mxu0 0
    %659 = vmatpush1.bf16.msra.mxu0 %v646
    %660 = vmatprep.subr.bf16.mxu0 0
    %661 = vmatpush1.bf16.msra.mxu0 %v645
    %662 = vmatprep.subr.bf16.mxu0 0
    %663 = vmatpush1.bf16.msra.mxu0 %v644
    %664 = vmatprep.subr.bf16.mxu0 0
    %665 = vmatpush1.bf16.msra.mxu0 %v643
    %666 = vmatprep.subr.bf16.mxu0 0
    %667 = vmatpush1.bf16.msra.mxu0 %v642
    %668 = vmatprep.subr.bf16.mxu0 0
    %669 = vmatpush1.bf16.msra.mxu0 %v641
    %670 = vmatprep.subr.bf16.mxu0 0
    %671 = vmatpush1.bf16.msra.mxu0 %v640
    %672 = vmatprep.subr.bf16.mxu0 0
    %673 = vmatpush2.bf16.msra.mxu0 0
    %674 = vmatprep.subr.bf16.mxu0 0
    %675 = vmatpush2.bf16.msra.mxu0 0
    %676 = vmatprep.subr.bf16.mxu0 0
    %677 = vmatpush2.bf16.msra.mxu0 0
    %678 = vmatprep.subr.bf16.mxu0 0
    %679 = vmatpush2.bf16.msra.mxu0 0
    %680 = vmatprep.subr.bf16.mxu0 0
    %681 = vmatpush2.bf16.msra.mxu0 0
    %682 = vmatprep.subr.bf16.mxu0 0
    %683 = vmatpush2.bf16.msra.mxu0 0
    %684 = vmatprep.subr.bf16.mxu0 0
    %685 = vmatpush2.bf16.msra.mxu0 0
    %686 = vmatprep.subr.bf16.mxu0 0
    %687 = vmatpush2.bf16.msra.mxu0 0
    %688 = vmatprep.mubr.bf16.mxu0 0
    %689 = vmatmul.mubr.bf16.gmra.mxu0 %v585
    %v690 = vpop.f32.mrf.mxu0
    %v691 = vadd.f32 %v607, %v690
    %v692 = vpop.f32.mrf.mxu0
    %v693 = vpop.f32.mrf.mxu0
    %v694 = vpop.f32.mrf.mxu0
    %695 = vdwg.mxu0
    %696 = vst [vmem:[#allocation10] sm:$0xff] %v691
    // Predicated region
    $region34: #{tpu_custom_call.1} parent=1 // pred_check
      _
    $region35: #{tpu_custom_call.1} parent=1 // pred_check_branch
      %698 = sbr.rel (0) target = $region37
    $region36: #{tpu_custom_call.1} parent=1 // pred_region
      %s700 = ssub.s32 128, 128
      %701 = vsyncadd [#allocation4], %s700
      %s703 = sshll.u32 [#allocation10], 4
      %s704 = int_to_ptr.vmem [resolvable:$true] %s703
      %706 = dma.vmem_to_hbm [thread:$0]  %s704, 128, %s4, [#allocation4]
    $region37: #{tpu_custom_call.1} parent=1 // pred_fallthru
      _
    // Predicated region
    $region38: #{tpu_custom_call.1} parent=1 // pred_check
      _
    $region39: #{tpu_custom_call.1} parent=1 // pred_check_branch
      %708 = sbr.rel (0) target = $region41
    $region40: #{tpu_custom_call.1} parent=1 // pred_region
      %709 = dma.done [#allocation4], 128
    $region41: #{tpu_custom_call.1} parent=1 // pred_fallthru
      _
    %710 = vsyncpa [#allocation3], 1
    %711 = vsyncpa [#allocation6], 1
    %712 = vsyncpa [#allocation9], 1
    %713 = vsyncpa [#allocation4], 1

</llo_original>
